<compile_context>
chip_gen: v6e
topology: v6e:2x2x1
jax: 0.10.0
libtpu: 0.0.40
codegen_flags: <defaults>
</compile_context>

<pallas_src>
import functools
import math

import jax
import jax.numpy as jnp
from jax import lax
from jax.experimental import pallas as pl
from jax.experimental.pallas import tpu as pltpu


def mha_kernel(x_ref, wqkv_ref, bqkv_ref, wo_ref, bo_ref, out_ref,
               *, n_head, d_k, d_v, batch, seq):
    BN = batch * seq
    dm = n_head * d_k  # d_model

    # One fused projection: [3*BN, D] @ [D, 3D] on the MXU, then pick the
    # diagonal blocks (q rows x q cols, k rows x k cols, v rows x v cols).
    proj = jnp.dot(x_ref[...], wqkv_ref[...],
                   preferred_element_type=jnp.float32) + bqkv_ref[...]

    q = proj[0 * BN:1 * BN, 0 * dm:1 * dm]   # already pre-scaled by 1/sqrt(d_k)
    k = proj[1 * BN:2 * BN, 1 * dm:2 * dm]
    v = proj[2 * BN:3 * BN, 2 * dm:3 * dm]

    # Statically unrolled per-(batch, head) attention; everything is tiny.
    for b in range(batch):
        r0 = b * seq
        acc = jnp.zeros((seq, dm), jnp.float32)
        for h in range(n_head):
            qh = q[r0:r0 + seq, h * d_k:(h + 1) * d_k]   # [seq, d_k]
            kh = k[r0:r0 + seq, h * d_k:(h + 1) * d_k]   # [seq, d_k]
            vh = v[r0:r0 + seq, h * d_v:(h + 1) * d_v]   # [seq, d_v]

            # scores = qh @ kh^T without an explicit transpose.
            scores = lax.dot_general(
                qh, kh,
                dimension_numbers=(((1,), (1,)), ((), ())),
                preferred_element_type=jnp.float32)      # [seq, seq]

            # Numerically stable softmax along the key axis (exact divide).
            scores = scores - jnp.max(scores, axis=-1, keepdims=True)
            p = jnp.exp(scores)
            attn = p / jnp.sum(p, axis=-1, keepdims=True)

            ctx = jnp.dot(attn, vh, preferred_element_type=jnp.float32)  # [seq, d_v]
            # Per-head accumulation into the output projection (no concat).
            acc = acc + jnp.dot(ctx, wo_ref[h * d_v:(h + 1) * d_v, :],
                                preferred_element_type=jnp.float32)      # [seq, dm]

        out_ref[r0:r0 + seq, :] = (acc + bo_ref[...]).astype(out_ref.dtype)


def multi_headed_attention(query, key, value, params, *, n_head):
    """query/key/value: [B, N, D] float32.  Returns [B, N, D]."""
    B, N, D = query.shape
    d_k = D // n_head
    d_v = D // n_head
    scale = 1.0 / math.sqrt(d_k)

    wq, bq = params["wq"], params["bq"]   # [D, H*d_k], [H*d_k]
    wk, bk = params["wk"], params["bk"]
    wv, bv = params["wv"], params["bv"]
    wo, bo = params["wo"], params["bo"]   # [H*d_v, D], [D]

    # Fuse the three projection weights/biases; fold the score scale into q's.
    wqkv = jnp.concatenate([wq * scale, wk, wv], axis=1)          # [D, 3D]
    bqkv = jnp.concatenate([bq * scale, bk, bv]).reshape(1, 3 * D)
    bo2 = bo.reshape(1, D)

    # Row-stack the token streams: [3*B*N, D].
    x_all = jnp.concatenate([query.reshape(B * N, D),
                             key.reshape(B * N, D),
                             value.reshape(B * N, D)], axis=0)

    kernel = functools.partial(mha_kernel, n_head=n_head, d_k=d_k, d_v=d_v,
                               batch=B, seq=N)

    out = pl.pallas_call(
        kernel,
        out_shape=jax.ShapeDtypeStruct((B * N, D), query.dtype),
        in_specs=[pl.BlockSpec(memory_space=pltpu.MemorySpace.VMEM)
                  for _ in range(5)],
        out_specs=pl.BlockSpec(memory_space=pltpu.MemorySpace.VMEM),
    )(x_all, wqkv, bqkv, wo, bo2)

    return out.reshape(B, N, D)


def reference_mha(query, key, value, params, *, n_head):
    """Pure-JAX reference matching the PyTorch forward (dropout = eval)."""
    B, N, D = query.shape
    d_k = D // n_head

    def linear(x, w, b):
        return x @ w + b

    q = linear(query, params["wq"], params["bq"]).reshape(B, N, n_head, d_k).transpose(0, 2, 1, 3)
    k = linear(key, params["wk"], params["bk"]).reshape(B, N, n_head, d_k).transpose(0, 2, 1, 3)
    v = linear(value, params["wv"], params["bv"]).reshape(B, N, n_head, d_k).transpose(0, 2, 1, 3)

    scores = jnp.einsum("bhqd,bhkd->bhqk", q, k) / (d_k ** 0.5)
    attn = jax.nn.softmax(scores, axis=-1)
    out = jnp.einsum("bhqk,bhkd->bhqd", attn, v)
    out = out.transpose(0, 2, 1, 3).reshape(B, N, n_head * d_k)
    return linear(out, params["wo"], params["bo"])


if __name__ == "__main__":
    # Small shapes implied by the module: batch=2, seq=8, d_model=32, n_head=4.
    B, N, D, H = 2, 8, 32, 4
    key0 = jax.random.PRNGKey(0)
    keys = jax.random.split(key0, 12)

    scale = 0.1
    params = {
        "wq": scale * jax.random.normal(keys[0], (D, D), jnp.float32),
        "bq": scale * jax.random.normal(keys[1], (D,), jnp.float32),
        "wk": scale * jax.random.normal(keys[2], (D, D), jnp.float32),
        "bk": scale * jax.random.normal(keys[3], (D,), jnp.float32),
        "wv": scale * jax.random.normal(keys[4], (D, D), jnp.float32),
        "bv": scale * jax.random.normal(keys[5], (D,), jnp.float32),
        "wo": scale * jax.random.normal(keys[6], (D, D), jnp.float32),
        "bo": scale * jax.random.normal(keys[7], (D,), jnp.float32),
    }

    query = jax.random.normal(keys[8], (B, N, D), jnp.float32)
    key_t = jax.random.normal(keys[9], (B, N, D), jnp.float32)
    value = jax.random.normal(keys[10], (B, N, D), jnp.float32)

    out = multi_headed_attention(query, key_t, value, params, n_head=H)
    out = jax.block_until_ready(out)

    ref = reference_mha(query, key_t, value, params, n_head=H)
    assert out.shape == (B, N, D)
    assert jnp.allclose(out, ref, atol=1e-4, rtol=1e-4), (
        float(jnp.max(jnp.abs(out - ref))))

    print("KERNEL_OK")
</pallas_src>

<mosaic_0001>
module attributes {stable_mosaic.version = 11 : i64} {
  func.func @mha_kernel(%arg0: memref<48x32xf32, #tpu.memory_space<vmem>>, %arg1: memref<32x96xf32, #tpu.memory_space<vmem>>, %arg2: memref<1x96xf32, #tpu.memory_space<vmem>>, %arg3: memref<32x32xf32, #tpu.memory_space<vmem>>, %arg4: memref<1x32xf32, #tpu.memory_space<vmem>>, %arg5: memref<16x32xf32, #tpu.memory_space<vmem>>) attributes {dimension_semantics = [], scalar_prefetch = 0 : i64, scratch_operands = 0 : i64, tpu.core_type = #tpu.core_type<tc>} {
    %c0 = arith.constant 0 : index
    %c0_0 = arith.constant 0 : index
    %0 = vector.load %arg0[%c0, %c0_0] : memref<48x32xf32, #tpu.memory_space<vmem>>, vector<48x32xf32>
    %c0_1 = arith.constant 0 : index
    %c0_2 = arith.constant 0 : index
    %1 = vector.load %arg1[%c0_1, %c0_2] : memref<32x96xf32, #tpu.memory_space<vmem>>, vector<32x96xf32>
    %cst = arith.constant dense<0.000000e+00> : vector<48x96xf32>
    %2 = tpu.matmul %0, %1, %cst {dimension_numbers = #tpu.dot_dimension_numbers<[1], [0], [0], [1], [0, 0, 1, 1], [], []>} : vector<48x32xf32>, vector<32x96xf32>, vector<48x96xf32> -> vector<48x96xf32>
    %c0_3 = arith.constant 0 : index
    %c0_4 = arith.constant 0 : index
    %3 = vector.load %arg2[%c0_3, %c0_4] : memref<1x96xf32, #tpu.memory_space<vmem>>, vector<1x96xf32>
    %4 = vector.broadcast %3 : vector<1x96xf32> to vector<48x96xf32>
    %5 = arith.addf %2, %4 : vector<48x96xf32>
    %6 = vector.extract_strided_slice %5 {offsets = [0, 0], sizes = [16, 32], strides = [1, 1]} : vector<48x96xf32> to vector<16x32xf32>
    %7 = vector.extract_strided_slice %5 {offsets = [16, 32], sizes = [16, 32], strides = [1, 1]} : vector<48x96xf32> to vector<16x32xf32>
    %8 = vector.extract_strided_slice %5 {offsets = [32, 64], sizes = [16, 32], strides = [1, 1]} : vector<48x96xf32> to vector<16x32xf32>
    %cst_5 = arith.constant 0.000000e+00 : f32
    %9 = vector.broadcast %cst_5 : f32 to vector<8x32xf32>
    %10 = vector.extract_strided_slice %6 {offsets = [0, 0], sizes = [8, 8], strides = [1, 1]} : vector<16x32xf32> to vector<8x8xf32>
    %11 = vector.extract_strided_slice %7 {offsets = [0, 0], sizes = [8, 8], strides = [1, 1]} : vector<16x32xf32> to vector<8x8xf32>
    %12 = vector.extract_strided_slice %8 {offsets = [0, 0], sizes = [8, 8], strides = [1, 1]} : vector<16x32xf32> to vector<8x8xf32>
    %cst_6 = arith.constant dense<0.000000e+00> : vector<8x8xf32>
    %13 = tpu.matmul %10, %11, %cst_6 {dimension_numbers = #tpu.dot_dimension_numbers<[1], [1], [0], [0], [0, 0, 1, 0], [], []>} : vector<8x8xf32>, vector<8x8xf32>, vector<8x8xf32> -> vector<8x8xf32>
    %cst_7 = arith.constant dense<0xFF800000> : vector<8xf32>
    %14 = vector.multi_reduction <maximumf>, %13, %cst_7 [1] : vector<8x8xf32> to vector<8xf32>
    %15 = vector.shape_cast %14 : vector<8xf32> to vector<8x1xf32>
    %16 = vector.broadcast %15 : vector<8x1xf32> to vector<8x8xf32>
    %17 = arith.subf %13, %16 : vector<8x8xf32>
    %18 = math.exp %17 : vector<8x8xf32>
    %cst_8 = arith.constant dense<0.000000e+00> : vector<8xf32>
    %19 = vector.multi_reduction <add>, %18, %cst_8 [1] : vector<8x8xf32> to vector<8xf32>
    %20 = vector.shape_cast %19 : vector<8xf32> to vector<8x1xf32>
    %21 = vector.broadcast %20 : vector<8x1xf32> to vector<8x8xf32>
    %22 = arith.divf %18, %21 : vector<8x8xf32>
    %cst_9 = arith.constant dense<0.000000e+00> : vector<8x8xf32>
    %23 = tpu.matmul %22, %12, %cst_9 {dimension_numbers = #tpu.dot_dimension_numbers<[1], [0], [0], [1], [0, 0, 1, 1], [], []>} : vector<8x8xf32>, vector<8x8xf32>, vector<8x8xf32> -> vector<8x8xf32>
    %c0_10 = arith.constant 0 : index
    %c0_11 = arith.constant 0 : index
    %24 = vector.load %arg3[%c0_10, %c0_11] : memref<32x32xf32, #tpu.memory_space<vmem>>, vector<8x32xf32>
    %cst_12 = arith.constant dense<0.000000e+00> : vector<8x32xf32>
    %25 = tpu.matmul %23, %24, %cst_12 {dimension_numbers = #tpu.dot_dimension_numbers<[1], [0], [0], [1], [0, 0, 1, 1], [], []>} : vector<8x8xf32>, vector<8x32xf32>, vector<8x32xf32> -> vector<8x32xf32>
    %26 = arith.addf %9, %25 : vector<8x32xf32>
    %27 = vector.extract_strided_slice %6 {offsets = [0, 8], sizes = [8, 8], strides = [1, 1]} : vector<16x32xf32> to vector<8x8xf32>
    %28 = vector.extract_strided_slice %7 {offsets = [0, 8], sizes = [8, 8], strides = [1, 1]} : vector<16x32xf32> to vector<8x8xf32>
    %29 = vector.extract_strided_slice %8 {offsets = [0, 8], sizes = [8, 8], strides = [1, 1]} : vector<16x32xf32> to vector<8x8xf32>
    %cst_13 = arith.constant dense<0.000000e+00> : vector<8x8xf32>
    %30 = tpu.matmul %27, %28, %cst_13 {dimension_numbers = #tpu.dot_dimension_numbers<[1], [1], [0], [0], [0, 0, 1, 0], [], []>} : vector<8x8xf32>, vector<8x8xf32>, vector<8x8xf32> -> vector<8x8xf32>
    %cst_14 = arith.constant dense<0xFF800000> : vector<8xf32>
    %31 = vector.multi_reduction <maximumf>, %30, %cst_14 [1] : vector<8x8xf32> to vector<8xf32>
    %32 = vector.shape_cast %31 : vector<8xf32> to vector<8x1xf32>
    %33 = vector.broadcast %32 : vector<8x1xf32> to vector<8x8xf32>
    %34 = arith.subf %30, %33 : vector<8x8xf32>
    %35 = math.exp %34 : vector<8x8xf32>
    %cst_15 = arith.constant dense<0.000000e+00> : vector<8xf32>
    %36 = vector.multi_reduction <add>, %35, %cst_15 [1] : vector<8x8xf32> to vector<8xf32>
    %37 = vector.shape_cast %36 : vector<8xf32> to vector<8x1xf32>
    %38 = vector.broadcast %37 : vector<8x1xf32> to vector<8x8xf32>
    %39 = arith.divf %35, %38 : vector<8x8xf32>
    %cst_16 = arith.constant dense<0.000000e+00> : vector<8x8xf32>
    %40 = tpu.matmul %39, %29, %cst_16 {dimension_numbers = #tpu.dot_dimension_numbers<[1], [0], [0], [1], [0, 0, 1, 1], [], []>} : vector<8x8xf32>, vector<8x8xf32>, vector<8x8xf32> -> vector<8x8xf32>
    %c8 = arith.constant 8 : index
    %c0_17 = arith.constant 0 : index
    %41 = vector.load %arg3[%c8, %c0_17] : memref<32x32xf32, #tpu.memory_space<vmem>>, vector<8x32xf32>
    %cst_18 = arith.constant dense<0.000000e+00> : vector<8x32xf32>
    %42 = tpu.matmul %40, %41, %cst_18 {dimension_numbers = #tpu.dot_dimension_numbers<[1], [0], [0], [1], [0, 0, 1, 1], [], []>} : vector<8x8xf32>, vector<8x32xf32>, vector<8x32xf32> -> vector<8x32xf32>
    %43 = arith.addf %26, %42 : vector<8x32xf32>
    %44 = vector.extract_strided_slice %6 {offsets = [0, 16], sizes = [8, 8], strides = [1, 1]} : vector<16x32xf32> to vector<8x8xf32>
    %45 = vector.extract_strided_slice %7 {offsets = [0, 16], sizes = [8, 8], strides = [1, 1]} : vector<16x32xf32> to vector<8x8xf32>
    %46 = vector.extract_strided_slice %8 {offsets = [0, 16], sizes = [8, 8], strides = [1, 1]} : vector<16x32xf32> to vector<8x8xf32>
    %cst_19 = arith.constant dense<0.000000e+00> : vector<8x8xf32>
    %47 = tpu.matmul %44, %45, %cst_19 {dimension_numbers = #tpu.dot_dimension_numbers<[1], [1], [0], [0], [0, 0, 1, 0], [], []>} : vector<8x8xf32>, vector<8x8xf32>, vector<8x8xf32> -> vector<8x8xf32>
    %cst_20 = arith.constant dense<0xFF800000> : vector<8xf32>
    %48 = vector.multi_reduction <maximumf>, %47, %cst_20 [1] : vector<8x8xf32> to vector<8xf32>
    %49 = vector.shape_cast %48 : vector<8xf32> to vector<8x1xf32>
    %50 = vector.broadcast %49 : vector<8x1xf32> to vector<8x8xf32>
    %51 = arith.subf %47, %50 : vector<8x8xf32>
    %52 = math.exp %51 : vector<8x8xf32>
    %cst_21 = arith.constant dense<0.000000e+00> : vector<8xf32>
    %53 = vector.multi_reduction <add>, %52, %cst_21 [1] : vector<8x8xf32> to vector<8xf32>
    %54 = vector.shape_cast %53 : vector<8xf32> to vector<8x1xf32>
    %55 = vector.broadcast %54 : vector<8x1xf32> to vector<8x8xf32>
    %56 = arith.divf %52, %55 : vector<8x8xf32>
    %cst_22 = arith.constant dense<0.000000e+00> : vector<8x8xf32>
    %57 = tpu.matmul %56, %46, %cst_22 {dimension_numbers = #tpu.dot_dimension_numbers<[1], [0], [0], [1], [0, 0, 1, 1], [], []>} : vector<8x8xf32>, vector<8x8xf32>, vector<8x8xf32> -> vector<8x8xf32>
    %c16 = arith.constant 16 : index
    %c0_23 = arith.constant 0 : index
    %58 = vector.load %arg3[%c16, %c0_23] : memref<32x32xf32, #tpu.memory_space<vmem>>, vector<8x32xf32>
    %cst_24 = arith.constant dense<0.000000e+00> : vector<8x32xf32>
    %59 = tpu.matmul %57, %58, %cst_24 {dimension_numbers = #tpu.dot_dimension_numbers<[1], [0], [0], [1], [0, 0, 1, 1], [], []>} : vector<8x8xf32>, vector<8x32xf32>, vector<8x32xf32> -> vector<8x32xf32>
    %60 = arith.addf %43, %59 : vector<8x32xf32>
    %61 = vector.extract_strided_slice %6 {offsets = [0, 24], sizes = [8, 8], strides = [1, 1]} : vector<16x32xf32> to vector<8x8xf32>
    %62 = vector.extract_strided_slice %7 {offsets = [0, 24], sizes = [8, 8], strides = [1, 1]} : vector<16x32xf32> to vector<8x8xf32>
    %63 = vector.extract_strided_slice %8 {offsets = [0, 24], sizes = [8, 8], strides = [1, 1]} : vector<16x32xf32> to vector<8x8xf32>
    %cst_25 = arith.constant dense<0.000000e+00> : vector<8x8xf32>
    %64 = tpu.matmul %61, %62, %cst_25 {dimension_numbers = #tpu.dot_dimension_numbers<[1], [1], [0], [0], [0, 0, 1, 0], [], []>} : vector<8x8xf32>, vector<8x8xf32>, vector<8x8xf32> -> vector<8x8xf32>
    %cst_26 = arith.constant dense<0xFF800000> : vector<8xf32>
    %65 = vector.multi_reduction <maximumf>, %64, %cst_26 [1] : vector<8x8xf32> to vector<8xf32>
    %66 = vector.shape_cast %65 : vector<8xf32> to vector<8x1xf32>
    %67 = vector.broadcast %66 : vector<8x1xf32> to vector<8x8xf32>
    %68 = arith.subf %64, %67 : vector<8x8xf32>
    %69 = math.exp %68 : vector<8x8xf32>
    %cst_27 = arith.constant dense<0.000000e+00> : vector<8xf32>
    %70 = vector.multi_reduction <add>, %69, %cst_27 [1] : vector<8x8xf32> to vector<8xf32>
    %71 = vector.shape_cast %70 : vector<8xf32> to vector<8x1xf32>
    %72 = vector.broadcast %71 : vector<8x1xf32> to vector<8x8xf32>
    %73 = arith.divf %69, %72 : vector<8x8xf32>
    %cst_28 = arith.constant dense<0.000000e+00> : vector<8x8xf32>
    %74 = tpu.matmul %73, %63, %cst_28 {dimension_numbers = #tpu.dot_dimension_numbers<[1], [0], [0], [1], [0, 0, 1, 1], [], []>} : vector<8x8xf32>, vector<8x8xf32>, vector<8x8xf32> -> vector<8x8xf32>
    %c24 = arith.constant 24 : index
    %c0_29 = arith.constant 0 : index
    %75 = vector.load %arg3[%c24, %c0_29] : memref<32x32xf32, #tpu.memory_space<vmem>>, vector<8x32xf32>
    %cst_30 = arith.constant dense<0.000000e+00> : vector<8x32xf32>
    %76 = tpu.matmul %74, %75, %cst_30 {dimension_numbers = #tpu.dot_dimension_numbers<[1], [0], [0], [1], [0, 0, 1, 1], [], []>} : vector<8x8xf32>, vector<8x32xf32>, vector<8x32xf32> -> vector<8x32xf32>
    %77 = arith.addf %60, %76 : vector<8x32xf32>
    %c0_31 = arith.constant 0 : index
    %c0_32 = arith.constant 0 : index
    %78 = vector.load %arg4[%c0_31, %c0_32] : memref<1x32xf32, #tpu.memory_space<vmem>>, vector<1x32xf32>
    %79 = vector.broadcast %78 : vector<1x32xf32> to vector<8x32xf32>
    %80 = arith.addf %77, %79 : vector<8x32xf32>
    %c0_33 = arith.constant 0 : index
    %c0_34 = arith.constant 0 : index
    %81 = vector.load %arg5[%c0_33, %c0_34] : memref<16x32xf32, #tpu.memory_space<vmem>>, vector<8x32xf32>
    tpu.vector_store %arg5[%c0_33, %c0_34], %80 {strides = array<i32>} : memref<16x32xf32, #tpu.memory_space<vmem>>, vector<8x32xf32>,
    %cst_35 = arith.constant 0.000000e+00 : f32
    %82 = vector.broadcast %cst_35 : f32 to vector<8x32xf32>
    %83 = vector.extract_strided_slice %6 {offsets = [8, 0], sizes = [8, 8], strides = [1, 1]} : vector<16x32xf32> to vector<8x8xf32>
    %84 = vector.extract_strided_slice %7 {offsets = [8, 0], sizes = [8, 8], strides = [1, 1]} : vector<16x32xf32> to vector<8x8xf32>
    %85 = vector.extract_strided_slice %8 {offsets = [8, 0], sizes = [8, 8], strides = [1, 1]} : vector<16x32xf32> to vector<8x8xf32>
    %cst_36 = arith.constant dense<0.000000e+00> : vector<8x8xf32>
    %86 = tpu.matmul %83, %84, %cst_36 {dimension_numbers = #tpu.dot_dimension_numbers<[1], [1], [0], [0], [0, 0, 1, 0], [], []>} : vector<8x8xf32>, vector<8x8xf32>, vector<8x8xf32> -> vector<8x8xf32>
    %cst_37 = arith.constant dense<0xFF800000> : vector<8xf32>
    %87 = vector.multi_reduction <maximumf>, %86, %cst_37 [1] : vector<8x8xf32> to vector<8xf32>
    %88 = vector.shape_cast %87 : vector<8xf32> to vector<8x1xf32>
    %89 = vector.broadcast %88 : vector<8x1xf32> to vector<8x8xf32>
    %90 = arith.subf %86, %89 : vector<8x8xf32>
    %91 = math.exp %90 : vector<8x8xf32>
    %cst_38 = arith.constant dense<0.000000e+00> : vector<8xf32>
    %92 = vector.multi_reduction <add>, %91, %cst_38 [1] : vector<8x8xf32> to vector<8xf32>
    %93 = vector.shape_cast %92 : vector<8xf32> to vector<8x1xf32>
    %94 = vector.broadcast %93 : vector<8x1xf32> to vector<8x8xf32>
    %95 = arith.divf %91, %94 : vector<8x8xf32>
    %cst_39 = arith.constant dense<0.000000e+00> : vector<8x8xf32>
    %96 = tpu.matmul %95, %85, %cst_39 {dimension_numbers = #tpu.dot_dimension_numbers<[1], [0], [0], [1], [0, 0, 1, 1], [], []>} : vector<8x8xf32>, vector<8x8xf32>, vector<8x8xf32> -> vector<8x8xf32>
    %c0_40 = arith.constant 0 : index
    %c0_41 = arith.constant 0 : index
    %97 = vector.load %arg3[%c0_40, %c0_41] : memref<32x32xf32, #tpu.memory_space<vmem>>, vector<8x32xf32>
    %cst_42 = arith.constant dense<0.000000e+00> : vector<8x32xf32>
    %98 = tpu.matmul %96, %97, %cst_42 {dimension_numbers = #tpu.dot_dimension_numbers<[1], [0], [0], [1], [0, 0, 1, 1], [], []>} : vector<8x8xf32>, vector<8x32xf32>, vector<8x32xf32> -> vector<8x32xf32>
    %99 = arith.addf %82, %98 : vector<8x32xf32>
    %100 = vector.extract_strided_slice %6 {offsets = [8, 8], sizes = [8, 8], strides = [1, 1]} : vector<16x32xf32> to vector<8x8xf32>
    %101 = vector.extract_strided_slice %7 {offsets = [8, 8], sizes = [8, 8], strides = [1, 1]} : vector<16x32xf32> to vector<8x8xf32>
    %102 = vector.extract_strided_slice %8 {offsets = [8, 8], sizes = [8, 8], strides = [1, 1]} : vector<16x32xf32> to vector<8x8xf32>
    %cst_43 = arith.constant dense<0.000000e+00> : vector<8x8xf32>
    %103 = tpu.matmul %100, %101, %cst_43 {dimension_numbers = #tpu.dot_dimension_numbers<[1], [1], [0], [0], [0, 0, 1, 0], [], []>} : vector<8x8xf32>, vector<8x8xf32>, vector<8x8xf32> -> vector<8x8xf32>
    %cst_44 = arith.constant dense<0xFF800000> : vector<8xf32>
    %104 = vector.multi_reduction <maximumf>, %103, %cst_44 [1] : vector<8x8xf32> to vector<8xf32>
    %105 = vector.shape_cast %104 : vector<8xf32> to vector<8x1xf32>
    %106 = vector.broadcast %105 : vector<8x1xf32> to vector<8x8xf32>
    %107 = arith.subf %103, %106 : vector<8x8xf32>
    %108 = math.exp %107 : vector<8x8xf32>
    %cst_45 = arith.constant dense<0.000000e+00> : vector<8xf32>
    %109 = vector.multi_reduction <add>, %108, %cst_45 [1] : vector<8x8xf32> to vector<8xf32>
    %110 = vector.shape_cast %109 : vector<8xf32> to vector<8x1xf32>
    %111 = vector.broadcast %110 : vector<8x1xf32> to vector<8x8xf32>
    %112 = arith.divf %108, %111 : vector<8x8xf32>
    %cst_46 = arith.constant dense<0.000000e+00> : vector<8x8xf32>
    %113 = tpu.matmul %112, %102, %cst_46 {dimension_numbers = #tpu.dot_dimension_numbers<[1], [0], [0], [1], [0, 0, 1, 1], [], []>} : vector<8x8xf32>, vector<8x8xf32>, vector<8x8xf32> -> vector<8x8xf32>
    %c8_47 = arith.constant 8 : index
    %c0_48 = arith.constant 0 : index
    %114 = vector.load %arg3[%c8_47, %c0_48] : memref<32x32xf32, #tpu.memory_space<vmem>>, vector<8x32xf32>
    %cst_49 = arith.constant dense<0.000000e+00> : vector<8x32xf32>
    %115 = tpu.matmul %113, %114, %cst_49 {dimension_numbers = #tpu.dot_dimension_numbers<[1], [0], [0], [1], [0, 0, 1, 1], [], []>} : vector<8x8xf32>, vector<8x32xf32>, vector<8x32xf32> -> vector<8x32xf32>
    %116 = arith.addf %99, %115 : vector<8x32xf32>
    %117 = vector.extract_strided_slice %6 {offsets = [8, 16], sizes = [8, 8], strides = [1, 1]} : vector<16x32xf32> to vector<8x8xf32>
    %118 = vector.extract_strided_slice %7 {offsets = [8, 16], sizes = [8, 8], strides = [1, 1]} : vector<16x32xf32> to vector<8x8xf32>
    %119 = vector.extract_strided_slice %8 {offsets = [8, 16], sizes = [8, 8], strides = [1, 1]} : vector<16x32xf32> to vector<8x8xf32>
    %cst_50 = arith.constant dense<0.000000e+00> : vector<8x8xf32>
    %120 = tpu.matmul %117, %118, %cst_50 {dimension_numbers = #tpu.dot_dimension_numbers<[1], [1], [0], [0], [0, 0, 1, 0], [], []>} : vector<8x8xf32>, vector<8x8xf32>, vector<8x8xf32> -> vector<8x8xf32>
    %cst_51 = arith.constant dense<0xFF800000> : vector<8xf32>
    %121 = vector.multi_reduction <maximumf>, %120, %cst_51 [1] : vector<8x8xf32> to vector<8xf32>
    %122 = vector.shape_cast %121 : vector<8xf32> to vector<8x1xf32>
    %123 = vector.broadcast %122 : vector<8x1xf32> to vector<8x8xf32>
    %124 = arith.subf %120, %123 : vector<8x8xf32>
    %125 = math.exp %124 : vector<8x8xf32>
    %cst_52 = arith.constant dense<0.000000e+00> : vector<8xf32>
    %126 = vector.multi_reduction <add>, %125, %cst_52 [1] : vector<8x8xf32> to vector<8xf32>
    %127 = vector.shape_cast %126 : vector<8xf32> to vector<8x1xf32>
    %128 = vector.broadcast %127 : vector<8x1xf32> to vector<8x8xf32>
    %129 = arith.divf %125, %128 : vector<8x8xf32>
    %cst_53 = arith.constant dense<0.000000e+00> : vector<8x8xf32>
    %130 = tpu.matmul %129, %119, %cst_53 {dimension_numbers = #tpu.dot_dimension_numbers<[1], [0], [0], [1], [0, 0, 1, 1], [], []>} : vector<8x8xf32>, vector<8x8xf32>, vector<8x8xf32> -> vector<8x8xf32>
    %c16_54 = arith.constant 16 : index
    %c0_55 = arith.constant 0 : index
    %131 = vector.load %arg3[%c16_54, %c0_55] : memref<32x32xf32, #tpu.memory_space<vmem>>, vector<8x32xf32>
    %cst_56 = arith.constant dense<0.000000e+00> : vector<8x32xf32>
    %132 = tpu.matmul %130, %131, %cst_56 {dimension_numbers = #tpu.dot_dimension_numbers<[1], [0], [0], [1], [0, 0, 1, 1], [], []>} : vector<8x8xf32>, vector<8x32xf32>, vector<8x32xf32> -> vector<8x32xf32>
    %133 = arith.addf %116, %132 : vector<8x32xf32>
    %134 = vector.extract_strided_slice %6 {offsets = [8, 24], sizes = [8, 8], strides = [1, 1]} : vector<16x32xf32> to vector<8x8xf32>
    %135 = vector.extract_strided_slice %7 {offsets = [8, 24], sizes = [8, 8], strides = [1, 1]} : vector<16x32xf32> to vector<8x8xf32>
    %136 = vector.extract_strided_slice %8 {offsets = [8, 24], sizes = [8, 8], strides = [1, 1]} : vector<16x32xf32> to vector<8x8xf32>
    %cst_57 = arith.constant dense<0.000000e+00> : vector<8x8xf32>
    %137 = tpu.matmul %134, %135, %cst_57 {dimension_numbers = #tpu.dot_dimension_numbers<[1], [1], [0], [0], [0, 0, 1, 0], [], []>} : vector<8x8xf32>, vector<8x8xf32>, vector<8x8xf32> -> vector<8x8xf32>
    %cst_58 = arith.constant dense<0xFF800000> : vector<8xf32>
    %138 = vector.multi_reduction <maximumf>, %137, %cst_58 [1] : vector<8x8xf32> to vector<8xf32>
    %139 = vector.shape_cast %138 : vector<8xf32> to vector<8x1xf32>
    %140 = vector.broadcast %139 : vector<8x1xf32> to vector<8x8xf32>
    %141 = arith.subf %137, %140 : vector<8x8xf32>
    %142 = math.exp %141 : vector<8x8xf32>
    %cst_59 = arith.constant dense<0.000000e+00> : vector<8xf32>
    %143 = vector.multi_reduction <add>, %142, %cst_59 [1] : vector<8x8xf32> to vector<8xf32>
    %144 = vector.shape_cast %143 : vector<8xf32> to vector<8x1xf32>
    %145 = vector.broadcast %144 : vector<8x1xf32> to vector<8x8xf32>
    %146 = arith.divf %142, %145 : vector<8x8xf32>
    %cst_60 = arith.constant dense<0.000000e+00> : vector<8x8xf32>
    %147 = tpu.matmul %146, %136, %cst_60 {dimension_numbers = #tpu.dot_dimension_numbers<[1], [0], [0], [1], [0, 0, 1, 1], [], []>} : vector<8x8xf32>, vector<8x8xf32>, vector<8x8xf32> -> vector<8x8xf32>
    %c24_61 = arith.constant 24 : index
    %c0_62 = arith.constant 0 : index
    %148 = vector.load %arg3[%c24_61, %c0_62] : memref<32x32xf32, #tpu.memory_space<vmem>>, vector<8x32xf32>
    %cst_63 = arith.constant dense<0.000000e+00> : vector<8x32xf32>
    %149 = tpu.matmul %147, %148, %cst_63 {dimension_numbers = #tpu.dot_dimension_numbers<[1], [0], [0], [1], [0, 0, 1, 1], [], []>} : vector<8x8xf32>, vector<8x32xf32>, vector<8x32xf32> -> vector<8x32xf32>
    %150 = arith.addf %133, %149 : vector<8x32xf32>
    %c0_64 = arith.constant 0 : index
    %c0_65 = arith.constant 0 : index
    %151 = vector.load %arg4[%c0_64, %c0_65] : memref<1x32xf32, #tpu.memory_space<vmem>>, vector<1x32xf32>
    %152 = vector.broadcast %151 : vector<1x32xf32> to vector<8x32xf32>
    %153 = arith.addf %150, %152 : vector<8x32xf32>
    %c8_66 = arith.constant 8 : index
    %c0_67 = arith.constant 0 : index
    %154 = vector.load %arg5[%c8_66, %c0_67] : memref<16x32xf32, #tpu.memory_space<vmem>>, vector<8x32xf32>
    tpu.vector_store %arg5[%c8_66, %c0_67], %153 {strides = array<i32>} : memref<16x32xf32, #tpu.memory_space<vmem>>, vector<8x32xf32>,
    return
  }
}

</mosaic_0001>

<llo_original>
// kernel: tpu_custom_call.1
$region0: #{tpu_custom_call.1}
  #allocation0 [shape = 'u32[]', space=smem, size = 0x4, offset = 0x4, fixed_abs, tag = 'smem constant byte address 0x4 - core index']
  #allocation1 [shape = 'u32[144,128]{1,0:T(1,128)}', space=vmem, size = 0x12000, scoped, tag = 'internal scratch']
  %s0 = inlined_call_operand.vmem [shape: f32[48,32], index: 0, kind: input, shape index: {}]
  %s1 = inlined_call_operand.vmem [shape: f32[32,96], index: 1, kind: input, shape index: {}]
  %s2 = inlined_call_operand.vmem [shape: f32[1,96], index: 2, kind: input, shape index: {}]
  %s3 = inlined_call_operand.vmem [shape: f32[32,32], index: 3, kind: input, shape index: {}]
  %s4 = inlined_call_operand.vmem [shape: f32[1,32], index: 4, kind: input, shape index: {}]
  %s5 = inlined_call_operand.hbm [shape: f32[16,32], index: 5, kind: output, shape index: {}]
  %s6 = sld [smem:[#allocation0]]
  $region30: #{tpu_custom_call.1} parent=0
    _
  %s8 = ssub.s32 1, %s6
  %s9 = scalar_select 0, %s8, %s6
  $region1: #{tpu_custom_call.1} parent=0
    #allocation2 [shape = 'u8[8192]{0}', space=vmem, size = 0x2000, scoped, tag = 'output window, operand 0, single buffered']
    #allocation3 [shape = 's32[1]{0}', space=sflag, size = 0x4, scoped, tag = 'scoped memory for tpu_custom_call.1']
    %10 = vsyncpa [#allocation3], 0
    // Predicated region
    $region2: #{tpu_custom_call.1} parent=1 // pred_check
      _
    $region3: #{tpu_custom_call.1} parent=1 // pred_check_branch
      %12 = sbr.rel (0) target = $region5
    $region4: #{tpu_custom_call.1} parent=1 // pred_region
      _
    $region5: #{tpu_custom_call.1} parent=1 // pred_fallthru
      _
    // Predicated region
    $region6: #{tpu_custom_call.1} parent=1 // pred_check
      _
    $region7: #{tpu_custom_call.1} parent=1 // pred_check_branch
      %14 = sbr.rel (0) target = $region9
    $region8: #{tpu_custom_call.1} parent=1 // pred_region
      _
    $region9: #{tpu_custom_call.1} parent=1 // pred_fallthru
      _
    // Predicated region
    $region10: #{tpu_custom_call.1} parent=1 // pred_check
      _
    $region11: #{tpu_custom_call.1} parent=1 // pred_check_branch
      %16 = sbr.rel (0) target = $region13
    $region12: #{tpu_custom_call.1} parent=1 // pred_region
      _
    $region13: #{tpu_custom_call.1} parent=1 // pred_fallthru
      _
    // Predicated region
    $region14: #{tpu_custom_call.1} parent=1 // pred_check
      _
    $region15: #{tpu_custom_call.1} parent=1 // pred_check_branch
      %18 = sbr.rel (0) target = $region17
    $region16: #{tpu_custom_call.1} parent=1 // pred_region
      _
    $region17: #{tpu_custom_call.1} parent=1 // pred_fallthru
      _
    // Predicated region
    $region18: #{tpu_custom_call.1} parent=1 // pred_check
      _
    $region19: #{tpu_custom_call.1} parent=1 // pred_check_branch
      %20 = sbr.rel (0) target = $region21
    $region20: #{tpu_custom_call.1} parent=1 // pred_region
      _
    $region21: #{tpu_custom_call.1} parent=1 // pred_fallthru
      _
    %v21 = vld [vmem:[%s0] sm:$0xff]
    %v22 = vld [vmem:[%s0 + $0x8] sm:$0xff]
    %v23 = vld [vmem:[%s0 + $0x10] sm:$0xff]
    %v24 = vld [vmem:[%s0 + $0x18] sm:$0xff]
    %v25 = vld [vmem:[%s0 + $0x20] sm:$0xff]
    %v26 = vld [vmem:[%s0 + $0x28] sm:$0xff]
    %v27 = vld [vmem:[%s1] sm:$0xff]
    %v28 = vld [vmem:[%s1 + $0x8] sm:$0xff]
    %v29 = vld [vmem:[%s1 + $0x10] sm:$0xff]
    %v30 = vld [vmem:[%s1 + $0x18] sm:$0xff]
    %v31 = vld [vmem:[%s2] sm:$0x1]
    %v33 = vlaneseq
    %v34 = vshrl.u32 %v33, 7
    %v35 = vsub.s32 0, %v34
    %v36 = vrot.slane %v31, %v35
    %vm38 = vcmask 261120
    %v40 = vsel %vm38, %v21, 0
    %v43 = vsel %vm38, %v22, 0
    %v46 = vsel %vm38, %v23, 0
    %v49 = vsel %vm38, %v24, 0
    %v52 = vsel %vm38, %v25, 0
    %v55 = vsel %vm38, %v26, 0
    %57 = vmatprep.subr.mxu0 0.0
    %58 = vmatpush1.msra.mxu0 0.0
    %59 = vmatprep.subr.mxu0 0.0
    %60 = vmatpush1.msra.mxu0 0.0
    %61 = vmatprep.subr.mxu0 0.0
    %62 = vmatpush1.msra.mxu0 0.0
    %63 = vmatprep.subr.mxu0 0.0
    %64 = vmatpush1.msra.mxu0 0.0
    %65 = vmatprep.subr.mxu0 0.0
    %66 = vmatpush1.msra.mxu0 0.0
    %67 = vmatprep.subr.mxu0 0.0
    %68 = vmatpush1.msra.mxu0 0.0
    %69 = vmatprep.subr.mxu0 0.0
    %70 = vmatpush1.msra.mxu0 0.0
    %71 = vmatprep.subr.mxu0 0.0
    %72 = vmatpush1.msra.mxu0 0.0
    %73 = vmatprep.subr.mxu0 0.0
    %74 = vmatpush1.msra.mxu0 0.0
    %75 = vmatprep.subr.mxu0 0.0
    %76 = vmatpush1.msra.mxu0 0.0
    %77 = vmatprep.subr.mxu0 0.0
    %78 = vmatpush1.msra.mxu0 0.0
    %79 = vmatprep.subr.mxu0 0.0
    %80 = vmatpush1.msra.mxu0 0.0
    %81 = vmatprep.subr.mxu0 0.0
    %82 = vmatpush1.msra.mxu0 %v30
    %83 = vmatprep.subr.mxu0 0.0
    %84 = vmatpush1.msra.mxu0 %v29
    %85 = vmatprep.subr.mxu0 0.0
    %86 = vmatpush1.msra.mxu0 %v28
    %87 = vmatprep.subr.mxu0 0.0
    %88 = vmatpush1.msra.mxu0 %v27
    %89 = vmatprep.subr.mxu0 0.0
    %90 = vmatpush2.msra.mxu0 0.0
    %91 = vmatprep.subr.mxu0 0.0
    %92 = vmatpush2.msra.mxu0 0.0
    %93 = vmatprep.subr.mxu0 0.0
    %94 = vmatpush2.msra.mxu0 0.0
    %95 = vmatprep.subr.mxu0 0.0
    %96 = vmatpush2.msra.mxu0 0.0
    %97 = vmatprep.subr.mxu0 0.0
    %98 = vmatpush2.msra.mxu0 0.0
    %99 = vmatprep.subr.mxu0 0.0
    %100 = vmatpush2.msra.mxu0 0.0
    %101 = vmatprep.subr.mxu0 0.0
    %102 = vmatpush2.msra.mxu0 0.0
    %103 = vmatprep.subr.mxu0 0.0
    %104 = vmatpush2.msra.mxu0 0.0
    %105 = vmatprep.subr.mxu0 0.0
    %106 = vmatpush2.msra.mxu0 0.0
    %107 = vmatprep.subr.mxu0 0.0
    %108 = vmatpush2.msra.mxu0 0.0
    %109 = vmatprep.subr.mxu0 0.0
    %110 = vmatpush2.msra.mxu0 0.0
    %111 = vmatprep.subr.mxu0 0.0
    %112 = vmatpush2.msra.mxu0 0.0
    %113 = vmatprep.subr.mxu0 0.0
    %114 = vmatpush2.msra.mxu0 0.0
    %115 = vmatprep.subr.mxu0 0.0
    %116 = vmatpush2.msra.mxu0 0.0
    %117 = vmatprep.subr.mxu0 0.0
    %118 = vmatpush2.msra.mxu0 0.0
    %119 = vmatprep.subr.mxu0 0.0
    %120 = vmatpush2.msra.mxu0 0.0
    %121 = vmatprep.mubr.f32.mxu0 0.0
    %122 = vmatmul.mubr.f32.gmra.mxu0 %v40
    %v123 = vpop.f32.mrf.mxu0
    %v124 = vadd.f32 %v36, %v123
    %v125 = vpop.f32.mrf.mxu0
    %126 = vmatprep.mubr.f32.mxu0 0.0
    %127 = vmatmul.mubr.f32.gmra.mxu0 %v43
    %v128 = vpop.f32.mrf.mxu0
    %v129 = vadd.f32 %v36, %v128
    %v130 = vpop.f32.mrf.mxu0
    %131 = vmatprep.mubr.f32.mxu0 0.0
    %132 = vmatmul.mubr.f32.gmra.mxu0 %v46
    %v133 = vpop.f32.mrf.mxu0
    %v134 = vadd.f32 %v36, %v133
    %v135 = vpop.f32.mrf.mxu0
    %136 = vmatprep.mubr.f32.mxu0 0.0
    %137 = vmatmul.mubr.f32.gmra.mxu0 %v49
    %v138 = vpop.f32.mrf.mxu0
    %v139 = vadd.f32 %v36, %v138
    %v140 = vpop.f32.mrf.mxu0
    %141 = vmatprep.mubr.f32.mxu0 0.0
    %142 = vmatmul.mubr.f32.gmra.mxu0 %v52
    %v143 = vpop.f32.mrf.mxu0
    %v144 = vadd.f32 %v36, %v143
    %v145 = vpop.f32.mrf.mxu0
    %146 = vmatprep.mubr.f32.mxu0 0.0
    %147 = vmatmul.mubr.f32.gmra.mxu0 %v55
    %v148 = vpop.f32.mrf.mxu0
    %v149 = vadd.f32 %v36, %v148
    %v150 = vpop.f32.mrf.mxu0
    %151 = vdwg.mxu0
    %153 = vrot.lane.b32.xlu0 %v134, 96
    %v154 = vpop.permute.xlu0 %153
    %vm155 = vcmask 64512
    %v157 = vsel %vm155, %v124, 0
    %v159 = vsel %vm155, %v154, 0
    %161 = vmatprep.subr.mxu0 0.0
    %162 = vmatpush1.xpose.msra.mxu0 0.0
    %163 = vmatprep.subr.mxu0 0.0
    %164 = vmatpush1.xpose.msra.mxu0 0.0
    %165 = vmatprep.subr.mxu0 0.0
    %166 = vmatpush1.xpose.msra.mxu0 0.0
    %167 = vmatprep.subr.mxu0 0.0
    %168 = vmatpush1.xpose.msra.mxu0 0.0
    %169 = vmatprep.subr.mxu0 0.0
    %170 = vmatpush1.xpose.msra.mxu0 0.0
    %171 = vmatprep.subr.mxu0 0.0
    %172 = vmatpush1.xpose.msra.mxu0 0.0
    %173 = vmatprep.subr.mxu0 0.0
    %174 = vmatpush1.xpose.msra.mxu0 0.0
    %175 = vmatprep.subr.mxu0 0.0
    %176 = vmatpush1.xpose.msra.mxu0 0.0
    %177 = vmatprep.subr.mxu0 0.0
    %178 = vmatpush1.xpose.msra.mxu0 0.0
    %179 = vmatprep.subr.mxu0 0.0
    %180 = vmatpush1.xpose.msra.mxu0 0.0
    %181 = vmatprep.subr.mxu0 0.0
    %182 = vmatpush1.xpose.msra.mxu0 0.0
    %183 = vmatprep.subr.mxu0 0.0
    %184 = vmatpush1.xpose.msra.mxu0 0.0
    %185 = vmatprep.subr.mxu0 0.0
    %186 = vmatpush1.xpose.msra.mxu0 0.0
    %187 = vmatprep.subr.mxu0 0.0
    %188 = vmatpush1.xpose.msra.mxu0 0.0
    %189 = vmatprep.subr.mxu0 0.0
    %190 = vmatpush1.xpose.msra.mxu0 0.0
    %191 = vmatprep.subr.mxu0 0.0
    %192 = vmatpush1.xpose.msra.mxu0 %v159
    %193 = vmatprep.subr.mxu0 0.0
    %194 = vmatpush2.xpose.msra.mxu0 0.0
    %195 = vmatprep.subr.mxu0 0.0
    %196 = vmatpush2.xpose.msra.mxu0 0.0
    %197 = vmatprep.subr.mxu0 0.0
    %198 = vmatpush2.xpose.msra.mxu0 0.0
    %199 = vmatprep.subr.mxu0 0.0
    %200 = vmatpush2.xpose.msra.mxu0 0.0
    %201 = vmatprep.subr.mxu0 0.0
    %202 = vmatpush2.xpose.msra.mxu0 0.0
    %203 = vmatprep.subr.mxu0 0.0
    %204 = vmatpush2.xpose.msra.mxu0 0.0
    %205 = vmatprep.subr.mxu0 0.0
    %206 = vmatpush2.xpose.msra.mxu0 0.0
    %207 = vmatprep.subr.mxu0 0.0
    %208 = vmatpush2.xpose.msra.mxu0 0.0
    %209 = vmatprep.subr.mxu0 0.0
    %210 = vmatpush2.xpose.msra.mxu0 0.0
    %211 = vmatprep.subr.mxu0 0.0
    %212 = vmatpush2.xpose.msra.mxu0 0.0
    %213 = vmatprep.subr.mxu0 0.0
    %214 = vmatpush2.xpose.msra.mxu0 0.0
    %215 = vmatprep.subr.mxu0 0.0
    %216 = vmatpush2.xpose.msra.mxu0 0.0
    %217 = vmatprep.subr.mxu0 0.0
    %218 = vmatpush2.xpose.msra.mxu0 0.0
    %219 = vmatprep.subr.mxu0 0.0
    %220 = vmatpush2.xpose.msra.mxu0 0.0
    %221 = vmatprep.subr.mxu0 0.0
    %222 = vmatpush2.xpose.msra.mxu0 0.0
    %223 = vmatprep.subr.mxu0 0.0
    %224 = vmatpush2.xpose.msra.mxu0 0.0
    %225 = vmatprep.mubr.f32.mxu0 0.0
    %226 = vmatmul.mubr.f32.gmra.mxu0 %v157
    %v227 = vpop.f32.mrf.mxu0
    %v228 = vadd.f32 0.0, %v227
    %v229 = vpop.f32.mrf.mxu0
    %230 = vdwg.mxu0
    %v231 = vsel %vm155, %v228, -inf
    %232 = vmax.xlane.f32.xlu0 %v231
    %v233 = vpop.xlane.xlu0 %232
    %v234 = vsub.f32 %v228, %v233
    %v235 = vmul.f32 %v234, 1.442695
    %v236 = vpow.pop %v235
    %v237 = vsel %vm155, %v236, 0.0
    %238 = vadd.xlane.f32.xlu0 %v237
    %v239 = vpop.xlane.xlu0 %238
    %v240 = vrcp.pop %v239
    %v241 = vmul.f32 %v236, %v240
    %243 = vrot.lane.b32.xlu0 %v144, 64
    %v244 = vpop.permute.xlu0 %243
    %v247 = vsel %vm155, %v241, 0
    %249 = vmatprep.subr.mxu0 0.0
    %250 = vmatpush1.msra.mxu0 0.0
    %251 = vmatprep.subr.mxu0 0.0
    %252 = vmatpush1.msra.mxu0 0.0
    %253 = vmatprep.subr.mxu0 0.0
    %254 = vmatpush1.msra.mxu0 0.0
    %255 = vmatprep.subr.mxu0 0.0
    %256 = vmatpush1.msra.mxu0 0.0
    %257 = vmatprep.subr.mxu0 0.0
    %258 = vmatpush1.msra.mxu0 0.0
    %259 = vmatprep.subr.mxu0 0.0
    %260 = vmatpush1.msra.mxu0 0.0
    %261 = vmatprep.subr.mxu0 0.0
    %262 = vmatpush1.msra.mxu0 0.0
    %263 = vmatprep.subr.mxu0 0.0
    %264 = vmatpush1.msra.mxu0 0.0
    %265 = vmatprep.subr.mxu0 0.0
    %266 = vmatpush1.msra.mxu0 0.0
    %267 = vmatprep.subr.mxu0 0.0
    %268 = vmatpush1.msra.mxu0 0.0
    %269 = vmatprep.subr.mxu0 0.0
    %270 = vmatpush1.msra.mxu0 0.0
    %271 = vmatprep.subr.mxu0 0.0
    %272 = vmatpush1.msra.mxu0 0.0
    %273 = vmatprep.subr.mxu0 0.0
    %274 = vmatpush1.msra.mxu0 0.0
    %275 = vmatprep.subr.mxu0 0.0
    %276 = vmatpush1.msra.mxu0 0.0
    %277 = vmatprep.subr.mxu0 0.0
    %278 = vmatpush1.msra.mxu0 0.0
    %279 = vmatprep.subr.mxu0 0.0
    %280 = vmatpush1.msra.mxu0 %v244
    %281 = vmatprep.subr.mxu0 0.0
    %282 = vmatpush2.msra.mxu0 0.0
    %283 = vmatprep.subr.mxu0 0.0
    %284 = vmatpush2.msra.mxu0 0.0
    %285 = vmatprep.subr.mxu0 0.0
    %286 = vmatpush2.msra.mxu0 0.0
    %287 = vmatprep.subr.mxu0 0.0
    %288 = vmatpush2.msra.mxu0 0.0
    %289 = vmatprep.subr.mxu0 0.0
    %290 = vmatpush2.msra.mxu0 0.0
    %291 = vmatprep.subr.mxu0 0.0
    %292 = vmatpush2.msra.mxu0 0.0
    %293 = vmatprep.subr.mxu0 0.0
    %294 = vmatpush2.msra.mxu0 0.0
    %295 = vmatprep.subr.mxu0 0.0
    %296 = vmatpush2.msra.mxu0 0.0
    %297 = vmatprep.subr.mxu0 0.0
    %298 = vmatpush2.msra.mxu0 0.0
    %299 = vmatprep.subr.mxu0 0.0
    %300 = vmatpush2.msra.mxu0 0.0
    %301 = vmatprep.subr.mxu0 0.0
    %302 = vmatpush2.msra.mxu0 0.0
    %303 = vmatprep.subr.mxu0 0.0
    %304 = vmatpush2.msra.mxu0 0.0
    %305 = vmatprep.subr.mxu0 0.0
    %306 = vmatpush2.msra.mxu0 0.0
    %307 = vmatprep.subr.mxu0 0.0
    %308 = vmatpush2.msra.mxu0 0.0
    %309 = vmatprep.subr.mxu0 0.0
    %310 = vmatpush2.msra.mxu0 0.0
    %311 = vmatprep.subr.mxu0 0.0
    %312 = vmatpush2.msra.mxu0 0.0
    %313 = vmatprep.mubr.f32.mxu0 0.0
    %314 = vmatmul.mubr.f32.gmra.mxu0 %v247
    %v315 = vpop.f32.mrf.mxu0
    %v316 = vadd.f32 0.0, %v315
    %v317 = vpop.f32.mrf.mxu0
    %318 = vdwg.mxu0
    %v319 = vld [vmem:[%s3] sm:$0xff]
    %320 = vrot.lane.b32.xlu0 %v124, 120
    %v321 = vpop.permute.xlu0 %320
    %322 = vrot.lane.b32.xlu0 %v134, 88
    %v323 = vpop.permute.xlu0 %322
    %v324 = vsel %vm155, %v321, 0
    %v326 = vsel %vm155, %v323, 0
    %328 = vmatprep.subr.mxu0 0.0
    %329 = vmatpush1.xpose.msra.mxu0 0.0
    %330 = vmatprep.subr.mxu0 0.0
    %331 = vmatpush1.xpose.msra.mxu0 0.0
    %332 = vmatprep.subr.mxu0 0.0
    %333 = vmatpush1.xpose.msra.mxu0 0.0
    %334 = vmatprep.subr.mxu0 0.0
    %335 = vmatpush1.xpose.msra.mxu0 0.0
    %336 = vmatprep.subr.mxu0 0.0
    %337 = vmatpush1.xpose.msra.mxu0 0.0
    %338 = vmatprep.subr.mxu0 0.0
    %339 = vmatpush1.xpose.msra.mxu0 0.0
    %340 = vmatprep.subr.mxu0 0.0
    %341 = vmatpush1.xpose.msra.mxu0 0.0
    %342 = vmatprep.subr.mxu0 0.0
    %343 = vmatpush1.xpose.msra.mxu0 0.0
    %344 = vmatprep.subr.mxu0 0.0
    %345 = vmatpush1.xpose.msra.mxu0 0.0
    %346 = vmatprep.subr.mxu0 0.0
    %347 = vmatpush1.xpose.msra.mxu0 0.0
    %348 = vmatprep.subr.mxu0 0.0
    %349 = vmatpush1.xpose.msra.mxu0 0.0
    %350 = vmatprep.subr.mxu0 0.0
    %351 = vmatpush1.xpose.msra.mxu0 0.0
    %352 = vmatprep.subr.mxu0 0.0
    %353 = vmatpush1.xpose.msra.mxu0 0.0
    %354 = vmatprep.subr.mxu0 0.0
    %355 = vmatpush1.xpose.msra.mxu0 0.0
    %356 = vmatprep.subr.mxu0 0.0
    %357 = vmatpush1.xpose.msra.mxu0 0.0
    %358 = vmatprep.subr.mxu0 0.0
    %359 = vmatpush1.xpose.msra.mxu0 %v326
    %360 = vmatprep.subr.mxu0 0.0
    %361 = vmatpush2.xpose.msra.mxu0 0.0
    %362 = vmatprep.subr.mxu0 0.0
    %363 = vmatpush2.xpose.msra.mxu0 0.0
    %364 = vmatprep.subr.mxu0 0.0
    %365 = vmatpush2.xpose.msra.mxu0 0.0
    %366 = vmatprep.subr.mxu0 0.0
    %367 = vmatpush2.xpose.msra.mxu0 0.0
    %368 = vmatprep.subr.mxu0 0.0
    %369 = vmatpush2.xpose.msra.mxu0 0.0
    %370 = vmatprep.subr.mxu0 0.0
    %371 = vmatpush2.xpose.msra.mxu0 0.0
    %372 = vmatprep.subr.mxu0 0.0
    %373 = vmatpush2.xpose.msra.mxu0 0.0
    %374 = vmatprep.subr.mxu0 0.0
    %375 = vmatpush2.xpose.msra.mxu0 0.0
    %376 = vmatprep.subr.mxu0 0.0
    %377 = vmatpush2.xpose.msra.mxu0 0.0
    %378 = vmatprep.subr.mxu0 0.0
    %379 = vmatpush2.xpose.msra.mxu0 0.0
    %380 = vmatprep.subr.mxu0 0.0
    %381 = vmatpush2.xpose.msra.mxu0 0.0
    %382 = vmatprep.subr.mxu0 0.0
    %383 = vmatpush2.xpose.msra.mxu0 0.0
    %384 = vmatprep.subr.mxu0 0.0
    %385 = vmatpush2.xpose.msra.mxu0 0.0
    %386 = vmatprep.subr.mxu0 0.0
    %387 = vmatpush2.xpose.msra.mxu0 0.0
    %388 = vmatprep.subr.mxu0 0.0
    %389 = vmatpush2.xpose.msra.mxu0 0.0
    %390 = vmatprep.subr.mxu0 0.0
    %391 = vmatpush2.xpose.msra.mxu0 0.0
    %392 = vmatprep.mubr.f32.mxu0 0.0
    %393 = vmatmul.mubr.f32.gmra.mxu0 %v324
    %v394 = vpop.f32.mrf.mxu0
    %v395 = vadd.f32 0.0, %v394
    %v396 = vpop.f32.mrf.mxu0
    %397 = vdwg.mxu0
    %v398 = vsel %vm155, %v395, -inf
    %399 = vmax.xlane.f32.xlu0 %v398
    %v400 = vpop.xlane.xlu0 %399
    %v401 = vsub.f32 %v395, %v400
    %v402 = vmul.f32 %v401, 1.442695
    %v403 = vpow.pop %v402
    %v404 = vsel %vm155, %v403, 0.0
    %405 = vadd.xlane.f32.xlu0 %v404
    %v406 = vpop.xlane.xlu0 %405
    %v407 = vrcp.pop %v406
    %v408 = vmul.f32 %v403, %v407
    %409 = vrot.lane.b32.xlu0 %v144, 56
    %v410 = vpop.permute.xlu0 %409
    %v413 = vsel %vm155, %v408, 0
    %415 = vmatprep.subr.mxu0 0.0
    %416 = vmatpush1.msra.mxu0 0.0
    %417 = vmatprep.subr.mxu0 0.0
    %418 = vmatpush1.msra.mxu0 0.0
    %419 = vmatprep.subr.mxu0 0.0
    %420 = vmatpush1.msra.mxu0 0.0
    %421 = vmatprep.subr.mxu0 0.0
    %422 = vmatpush1.msra.mxu0 0.0
    %423 = vmatprep.subr.mxu0 0.0
    %424 = vmatpush1.msra.mxu0 0.0
    %425 = vmatprep.subr.mxu0 0.0
    %426 = vmatpush1.msra.mxu0 0.0
    %427 = vmatprep.subr.mxu0 0.0
    %428 = vmatpush1.msra.mxu0 0.0
    %429 = vmatprep.subr.mxu0 0.0
    %430 = vmatpush1.msra.mxu0 0.0
    %431 = vmatprep.subr.mxu0 0.0
    %432 = vmatpush1.msra.mxu0 0.0
    %433 = vmatprep.subr.mxu0 0.0
    %434 = vmatpush1.msra.mxu0 0.0
    %435 = vmatprep.subr.mxu0 0.0
    %436 = vmatpush1.msra.mxu0 0.0
    %437 = vmatprep.subr.mxu0 0.0
    %438 = vmatpush1.msra.mxu0 0.0
    %439 = vmatprep.subr.mxu0 0.0
    %440 = vmatpush1.msra.mxu0 0.0
    %441 = vmatprep.subr.mxu0 0.0
    %442 = vmatpush1.msra.mxu0 0.0
    %443 = vmatprep.subr.mxu0 0.0
    %444 = vmatpush1.msra.mxu0 0.0
    %445 = vmatprep.subr.mxu0 0.0
    %446 = vmatpush1.msra.mxu0 %v410
    %447 = vmatprep.subr.mxu0 0.0
    %448 = vmatpush2.msra.mxu0 0.0
    %449 = vmatprep.subr.mxu0 0.0
    %450 = vmatpush2.msra.mxu0 0.0
    %451 = vmatprep.subr.mxu0 0.0
    %452 = vmatpush2.msra.mxu0 0.0
    %453 = vmatprep.subr.mxu0 0.0
    %454 = vmatpush2.msra.mxu0 0.0
    %455 = vmatprep.subr.mxu0 0.0
    %456 = vmatpush2.msra.mxu0 0.0
    %457 = vmatprep.subr.mxu0 0.0
    %458 = vmatpush2.msra.mxu0 0.0
    %459 = vmatprep.subr.mxu0 0.0
    %460 = vmatpush2.msra.mxu0 0.0
    %461 = vmatprep.subr.mxu0 0.0
    %462 = vmatpush2.msra.mxu0 0.0
    %463 = vmatprep.subr.mxu0 0.0
    %464 = vmatpush2.msra.mxu0 0.0
    %465 = vmatprep.subr.mxu0 0.0
    %466 = vmatpush2.msra.mxu0 0.0
    %467 = vmatprep.subr.mxu0 0.0
    %468 = vmatpush2.msra.mxu0 0.0
    %469 = vmatprep.subr.mxu0 0.0
    %470 = vmatpush2.msra.mxu0 0.0
    %471 = vmatprep.subr.mxu0 0.0
    %472 = vmatpush2.msra.mxu0 0.0
    %473 = vmatprep.subr.mxu0 0.0
    %474 = vmatpush2.msra.mxu0 0.0
    %475 = vmatprep.subr.mxu0 0.0
    %476 = vmatpush2.msra.mxu0 0.0
    %477 = vmatprep.subr.mxu0 0.0
    %478 = vmatpush2.msra.mxu0 0.0
    %479 = vmatprep.mubr.f32.mxu0 0.0
    %480 = vmatmul.mubr.f32.gmra.mxu0 %v413
    %v481 = vpop.f32.mrf.mxu0
    %v482 = vadd.f32 0.0, %v481
    %v483 = vpop.f32.mrf.mxu0
    %484 = vdwg.mxu0
    %v485 = vld [vmem:[%s3 + $0x8] sm:$0xff]
    %v487 = vsel %vm155, %v482, 0
    %489 = vmatprep.subr.mxu0 0.0
    %490 = vmatpush1.msra.mxu0 0.0
    %491 = vmatprep.subr.mxu0 0.0
    %492 = vmatpush1.msra.mxu0 0.0
    %493 = vmatprep.subr.mxu0 0.0
    %494 = vmatpush1.msra.mxu0 0.0
    %495 = vmatprep.subr.mxu0 0.0
    %496 = vmatpush1.msra.mxu0 0.0
    %497 = vmatprep.subr.mxu0 0.0
    %498 = vmatpush1.msra.mxu0 0.0
    %499 = vmatprep.subr.mxu0 0.0
    %500 = vmatpush1.msra.mxu0 0.0
    %501 = vmatprep.subr.mxu0 0.0
    %502 = vmatpush1.msra.mxu0 0.0
    %503 = vmatprep.subr.mxu0 0.0
    %504 = vmatpush1.msra.mxu0 0.0
    %505 = vmatprep.subr.mxu0 0.0
    %506 = vmatpush1.msra.mxu0 0.0
    %507 = vmatprep.subr.mxu0 0.0
    %508 = vmatpush1.msra.mxu0 0.0
    %509 = vmatprep.subr.mxu0 0.0
    %510 = vmatpush1.msra.mxu0 0.0
    %511 = vmatprep.subr.mxu0 0.0
    %512 = vmatpush1.msra.mxu0 0.0
    %513 = vmatprep.subr.mxu0 0.0
    %514 = vmatpush1.msra.mxu0 0.0
    %515 = vmatprep.subr.mxu0 0.0
    %516 = vmatpush1.msra.mxu0 0.0
    %517 = vmatprep.subr.mxu0 0.0
    %518 = vmatpush1.msra.mxu0 0.0
    %519 = vmatprep.subr.mxu0 0.0
    %520 = vmatpush1.msra.mxu0 %v485
    %521 = vmatprep.subr.mxu0 0.0
    %522 = vmatpush2.msra.mxu0 0.0
    %523 = vmatprep.subr.mxu0 0.0
    %524 = vmatpush2.msra.mxu0 0.0
    %525 = vmatprep.subr.mxu0 0.0
    %526 = vmatpush2.msra.mxu0 0.0
    %527 = vmatprep.subr.mxu0 0.0
    %528 = vmatpush2.msra.mxu0 0.0
    %529 = vmatprep.subr.mxu0 0.0
    %530 = vmatpush2.msra.mxu0 0.0
    %531 = vmatprep.subr.mxu0 0.0
    %532 = vmatpush2.msra.mxu0 0.0
    %533 = vmatprep.subr.mxu0 0.0
    %534 = vmatpush2.msra.mxu0 0.0
    %535 = vmatprep.subr.mxu0 0.0
    %536 = vmatpush2.msra.mxu0 0.0
    %537 = vmatprep.subr.mxu0 0.0
    %538 = vmatpush2.msra.mxu0 0.0
    %539 = vmatprep.subr.mxu0 0.0
    %540 = vmatpush2.msra.mxu0 0.0
    %541 = vmatprep.subr.mxu0 0.0
    %542 = vmatpush2.msra.mxu0 0.0
    %543 = vmatprep.subr.mxu0 0.0
    %544 = vmatpush2.msra.mxu0 0.0
    %545 = vmatprep.subr.mxu0 0.0
    %546 = vmatpush2.msra.mxu0 0.0
    %547 = vmatprep.subr.mxu0 0.0
    %548 = vmatpush2.msra.mxu0 0.0
    %549 = vmatprep.subr.mxu0 0.0
    %550 = vmatpush2.msra.mxu0 0.0
    %551 = vmatprep.subr.mxu0 0.0
    %552 = vmatpush2.msra.mxu0 0.0
    %553 = vmatprep.mubr.f32.mxu0 0.0
    %554 = vmatmul.mubr.f32.gmra.mxu0 %v487
    %v555 = vpop.f32.mrf.mxu0
    %v556 = vadd.f32 0.0, %v555
    %v557 = vpop.f32.mrf.mxu0
    %558 = vdwg.mxu0
    %v560 = vsel %vm155, %v316, 0
    %562 = vmatprep.subr.mxu0 0.0
    %563 = vmatpush1.msra.mxu0 0.0
    %564 = vmatprep.subr.mxu0 0.0
    %565 = vmatpush1.msra.mxu0 0.0
    %566 = vmatprep.subr.mxu0 0.0
    %567 = vmatpush1.msra.mxu0 0.0
    %568 = vmatprep.subr.mxu0 0.0
    %569 = vmatpush1.msra.mxu0 0.0
    %570 = vmatprep.subr.mxu0 0.0
    %571 = vmatpush1.msra.mxu0 0.0
    %572 = vmatprep.subr.mxu0 0.0
    %573 = vmatpush1.msra.mxu0 0.0
    %574 = vmatprep.subr.mxu0 0.0
    %575 = vmatpush1.msra.mxu0 0.0
    %576 = vmatprep.subr.mxu0 0.0
    %577 = vmatpush1.msra.mxu0 0.0
    %578 = vmatprep.subr.mxu0 0.0
    %579 = vmatpush1.msra.mxu0 0.0
    %580 = vmatprep.subr.mxu0 0.0
    %581 = vmatpush1.msra.mxu0 0.0
    %582 = vmatprep.subr.mxu0 0.0
    %583 = vmatpush1.msra.mxu0 0.0
    %584 = vmatprep.subr.mxu0 0.0
    %585 = vmatpush1.msra.mxu0 0.0
    %586 = vmatprep.subr.mxu0 0.0
    %587 = vmatpush1.msra.mxu0 0.0
    %588 = vmatprep.subr.mxu0 0.0
    %589 = vmatpush1.msra.mxu0 0.0
    %590 = vmatprep.subr.mxu0 0.0
    %591 = vmatpush1.msra.mxu0 0.0
    %592 = vmatprep.subr.mxu0 0.0
    %593 = vmatpush1.msra.mxu0 %v319
    %594 = vmatprep.subr.mxu0 0.0
    %595 = vmatpush2.msra.mxu0 0.0
    %596 = vmatprep.subr.mxu0 0.0
    %597 = vmatpush2.msra.mxu0 0.0
    %598 = vmatprep.subr.mxu0 0.0
    %599 = vmatpush2.msra.mxu0 0.0
    %600 = vmatprep.subr.mxu0 0.0
    %601 = vmatpush2.msra.mxu0 0.0
    %602 = vmatprep.subr.mxu0 0.0
    %603 = vmatpush2.msra.mxu0 0.0
    %604 = vmatprep.subr.mxu0 0.0
    %605 = vmatpush2.msra.mxu0 0.0
    %606 = vmatprep.subr.mxu0 0.0
    %607 = vmatpush2.msra.mxu0 0.0
    %608 = vmatprep.subr.mxu0 0.0
    %609 = vmatpush2.msra.mxu0 0.0
    %610 = vmatprep.subr.mxu0 0.0
    %611 = vmatpush2.msra.mxu0 0.0
    %612 = vmatprep.subr.mxu0 0.0
    %613 = vmatpush2.msra.mxu0 0.0
    %614 = vmatprep.subr.mxu0 0.0
    %615 = vmatpush2.msra.mxu0 0.0
    %616 = vmatprep.subr.mxu0 0.0
    %617 = vmatpush2.msra.mxu0 0.0
    %618 = vmatprep.subr.mxu0 0.0
    %619 = vmatpush2.msra.mxu0 0.0
    %620 = vmatprep.subr.mxu0 0.0
    %621 = vmatpush2.msra.mxu0 0.0
    %622 = vmatprep.subr.mxu0 0.0
    %623 = vmatpush2.msra.mxu0 0.0
    %624 = vmatprep.subr.mxu0 0.0
    %625 = vmatpush2.msra.mxu0 0.0
    %626 = vmatprep.mubr.f32.mxu0 0.0
    %627 = vmatmul.mubr.f32.gmra.mxu0 %v560
    %v628 = vpop.f32.mrf.mxu0
    %v629 = vadd.f32 %v556, %v628
    %v630 = vpop.f32.mrf.mxu0
    %631 = vdwg.mxu0
    %632 = vrot.lane.b32.xlu0 %v124, 112
    %v633 = vpop.permute.xlu0 %632
    %634 = vrot.lane.b32.xlu0 %v134, 80
    %v635 = vpop.permute.xlu0 %634
    %v636 = vsel %vm155, %v633, 0
    %v638 = vsel %vm155, %v635, 0
    %640 = vmatprep.subr.mxu0 0.0
    %641 = vmatpush1.xpose.msra.mxu0 0.0
    %642 = vmatprep.subr.mxu0 0.0
    %643 = vmatpush1.xpose.msra.mxu0 0.0
    %644 = vmatprep.subr.mxu0 0.0
    %645 = vmatpush1.xpose.msra.mxu0 0.0
    %646 = vmatprep.subr.mxu0 0.0
    %647 = vmatpush1.xpose.msra.mxu0 0.0
    %648 = vmatprep.subr.mxu0 0.0
    %649 = vmatpush1.xpose.msra.mxu0 0.0
    %650 = vmatprep.subr.mxu0 0.0
    %651 = vmatpush1.xpose.msra.mxu0 0.0
    %652 = vmatprep.subr.mxu0 0.0
    %653 = vmatpush1.xpose.msra.mxu0 0.0
    %654 = vmatprep.subr.mxu0 0.0
    %655 = vmatpush1.xpose.msra.mxu0 0.0
    %656 = vmatprep.subr.mxu0 0.0
    %657 = vmatpush1.xpose.msra.mxu0 0.0
    %658 = vmatprep.subr.mxu0 0.0
    %659 = vmatpush1.xpose.msra.mxu0 0.0
    %660 = vmatprep.subr.mxu0 0.0
    %661 = vmatpush1.xpose.msra.mxu0 0.0
    %662 = vmatprep.subr.mxu0 0.0
    %663 = vmatpush1.xpose.msra.mxu0 0.0
    %664 = vmatprep.subr.mxu0 0.0
    %665 = vmatpush1.xpose.msra.mxu0 0.0
    %666 = vmatprep.subr.mxu0 0.0
    %667 = vmatpush1.xpose.msra.mxu0 0.0
    %668 = vmatprep.subr.mxu0 0.0
    %669 = vmatpush1.xpose.msra.mxu0 0.0
    %670 = vmatprep.subr.mxu0 0.0
    %671 = vmatpush1.xpose.msra.mxu0 %v638
    %672 = vmatprep.subr.mxu0 0.0
    %673 = vmatpush2.xpose.msra.mxu0 0.0
    %674 = vmatprep.subr.mxu0 0.0
    %675 = vmatpush2.xpose.msra.mxu0 0.0
    %676 = vmatprep.subr.mxu0 0.0
    %677 = vmatpush2.xpose.msra.mxu0 0.0
    %678 = vmatprep.subr.mxu0 0.0
    %679 = vmatpush2.xpose.msra.mxu0 0.0
    %680 = vmatprep.subr.mxu0 0.0
    %681 = vmatpush2.xpose.msra.mxu0 0.0
    %682 = vmatprep.subr.mxu0 0.0
    %683 = vmatpush2.xpose.msra.mxu0 0.0
    %684 = vmatprep.subr.mxu0 0.0
    %685 = vmatpush2.xpose.msra.mxu0 0.0
    %686 = vmatprep.subr.mxu0 0.0
    %687 = vmatpush2.xpose.msra.mxu0 0.0
    %688 = vmatprep.subr.mxu0 0.0
    %689 = vmatpush2.xpose.msra.mxu0 0.0
    %690 = vmatprep.subr.mxu0 0.0
    %691 = vmatpush2.xpose.msra.mxu0 0.0
    %692 = vmatprep.subr.mxu0 0.0
    %693 = vmatpush2.xpose.msra.mxu0 0.0
    %694 = vmatprep.subr.mxu0 0.0
    %695 = vmatpush2.xpose.msra.mxu0 0.0
    %696 = vmatprep.subr.mxu0 0.0
    %697 = vmatpush2.xpose.msra.mxu0 0.0
    %698 = vmatprep.subr.mxu0 0.0
    %699 = vmatpush2.xpose.msra.mxu0 0.0
    %700 = vmatprep.subr.mxu0 0.0
    %701 = vmatpush2.xpose.msra.mxu0 0.0
    %702 = vmatprep.subr.mxu0 0.0
    %703 = vmatpush2.xpose.msra.mxu0 0.0
    %704 = vmatprep.mubr.f32.mxu0 0.0
    %705 = vmatmul.mubr.f32.gmra.mxu0 %v636
    %v706 = vpop.f32.mrf.mxu0
    %v707 = vadd.f32 0.0, %v706
    %v708 = vpop.f32.mrf.mxu0
    %709 = vdwg.mxu0
    %v710 = vsel %vm155, %v707, -inf
    %711 = vmax.xlane.f32.xlu0 %v710
    %v712 = vpop.xlane.xlu0 %711
    %v713 = vsub.f32 %v707, %v712
    %v714 = vmul.f32 %v713, 1.442695
    %v715 = vpow.pop %v714
    %v716 = vsel %vm155, %v715, 0.0
    %717 = vadd.xlane.f32.xlu0 %v716
    %v718 = vpop.xlane.xlu0 %717
    %v719 = vrcp.pop %v718
    %v720 = vmul.f32 %v715, %v719
    %721 = vrot.lane.b32.xlu0 %v144, 48
    %v722 = vpop.permute.xlu0 %721
    %v725 = vsel %vm155, %v720, 0
    %727 = vmatprep.subr.mxu0 0.0
    %728 = vmatpush1.msra.mxu0 0.0
    %729 = vmatprep.subr.mxu0 0.0
    %730 = vmatpush1.msra.mxu0 0.0
    %731 = vmatprep.subr.mxu0 0.0
    %732 = vmatpush1.msra.mxu0 0.0
    %733 = vmatprep.subr.mxu0 0.0
    %734 = vmatpush1.msra.mxu0 0.0
    %735 = vmatprep.subr.mxu0 0.0
    %736 = vmatpush1.msra.mxu0 0.0
    %737 = vmatprep.subr.mxu0 0.0
    %738 = vmatpush1.msra.mxu0 0.0
    %739 = vmatprep.subr.mxu0 0.0
    %740 = vmatpush1.msra.mxu0 0.0
    %741 = vmatprep.subr.mxu0 0.0
    %742 = vmatpush1.msra.mxu0 0.0
    %743 = vmatprep.subr.mxu0 0.0
    %744 = vmatpush1.msra.mxu0 0.0
    %745 = vmatprep.subr.mxu0 0.0
    %746 = vmatpush1.msra.mxu0 0.0
    %747 = vmatprep.subr.mxu0 0.0
    %748 = vmatpush1.msra.mxu0 0.0
    %749 = vmatprep.subr.mxu0 0.0
    %750 = vmatpush1.msra.mxu0 0.0
    %751 = vmatprep.subr.mxu0 0.0
    %752 = vmatpush1.msra.mxu0 0.0
    %753 = vmatprep.subr.mxu0 0.0
    %754 = vmatpush1.msra.mxu0 0.0
    %755 = vmatprep.subr.mxu0 0.0
    %756 = vmatpush1.msra.mxu0 0.0
    %757 = vmatprep.subr.mxu0 0.0
    %758 = vmatpush1.msra.mxu0 %v722
    %759 = vmatprep.subr.mxu0 0.0
    %760 = vmatpush2.msra.mxu0 0.0
    %761 = vmatprep.subr.mxu0 0.0
    %762 = vmatpush2.msra.mxu0 0.0
    %763 = vmatprep.subr.mxu0 0.0
    %764 = vmatpush2.msra.mxu0 0.0
    %765 = vmatprep.subr.mxu0 0.0
    %766 = vmatpush2.msra.mxu0 0.0
    %767 = vmatprep.subr.mxu0 0.0
    %768 = vmatpush2.msra.mxu0 0.0
    %769 = vmatprep.subr.mxu0 0.0
    %770 = vmatpush2.msra.mxu0 0.0
    %771 = vmatprep.subr.mxu0 0.0
    %772 = vmatpush2.msra.mxu0 0.0
    %773 = vmatprep.subr.mxu0 0.0
    %774 = vmatpush2.msra.mxu0 0.0
    %775 = vmatprep.subr.mxu0 0.0
    %776 = vmatpush2.msra.mxu0 0.0
    %777 = vmatprep.subr.mxu0 0.0
    %778 = vmatpush2.msra.mxu0 0.0
    %779 = vmatprep.subr.mxu0 0.0
    %780 = vmatpush2.msra.mxu0 0.0
    %781 = vmatprep.subr.mxu0 0.0
    %782 = vmatpush2.msra.mxu0 0.0
    %783 = vmatprep.subr.mxu0 0.0
    %784 = vmatpush2.msra.mxu0 0.0
    %785 = vmatprep.subr.mxu0 0.0
    %786 = vmatpush2.msra.mxu0 0.0
    %787 = vmatprep.subr.mxu0 0.0
    %788 = vmatpush2.msra.mxu0 0.0
    %789 = vmatprep.subr.mxu0 0.0
    %790 = vmatpush2.msra.mxu0 0.0
    %791 = vmatprep.mubr.f32.mxu0 0.0
    %792 = vmatmul.mubr.f32.gmra.mxu0 %v725
    %v793 = vpop.f32.mrf.mxu0
    %v794 = vadd.f32 0.0, %v793
    %v795 = vpop.f32.mrf.mxu0
    %796 = vdwg.mxu0
    %v797 = vld [vmem:[%s3 + $0x10] sm:$0xff]
    %v799 = vsel %vm155, %v794, 0
    %801 = vmatprep.subr.mxu0 0.0
    %802 = vmatpush1.msra.mxu0 0.0
    %803 = vmatprep.subr.mxu0 0.0
    %804 = vmatpush1.msra.mxu0 0.0
    %805 = vmatprep.subr.mxu0 0.0
    %806 = vmatpush1.msra.mxu0 0.0
    %807 = vmatprep.subr.mxu0 0.0
    %808 = vmatpush1.msra.mxu0 0.0
    %809 = vmatprep.subr.mxu0 0.0
    %810 = vmatpush1.msra.mxu0 0.0
    %811 = vmatprep.subr.mxu0 0.0
    %812 = vmatpush1.msra.mxu0 0.0
    %813 = vmatprep.subr.mxu0 0.0
    %814 = vmatpush1.msra.mxu0 0.0
    %815 = vmatprep.subr.mxu0 0.0
    %816 = vmatpush1.msra.mxu0 0.0
    %817 = vmatprep.subr.mxu0 0.0
    %818 = vmatpush1.msra.mxu0 0.0
    %819 = vmatprep.subr.mxu0 0.0
    %820 = vmatpush1.msra.mxu0 0.0
    %821 = vmatprep.subr.mxu0 0.0
    %822 = vmatpush1.msra.mxu0 0.0
    %823 = vmatprep.subr.mxu0 0.0
    %824 = vmatpush1.msra.mxu0 0.0
    %825 = vmatprep.subr.mxu0 0.0
    %826 = vmatpush1.msra.mxu0 0.0
    %827 = vmatprep.subr.mxu0 0.0
    %828 = vmatpush1.msra.mxu0 0.0
    %829 = vmatprep.subr.mxu0 0.0
    %830 = vmatpush1.msra.mxu0 0.0
    %831 = vmatprep.subr.mxu0 0.0
    %832 = vmatpush1.msra.mxu0 %v797
    %833 = vmatprep.subr.mxu0 0.0
    %834 = vmatpush2.msra.mxu0 0.0
    %835 = vmatprep.subr.mxu0 0.0
    %836 = vmatpush2.msra.mxu0 0.0
    %837 = vmatprep.subr.mxu0 0.0
    %838 = vmatpush2.msra.mxu0 0.0
    %839 = vmatprep.subr.mxu0 0.0
    %840 = vmatpush2.msra.mxu0 0.0
    %841 = vmatprep.subr.mxu0 0.0
    %842 = vmatpush2.msra.mxu0 0.0
    %843 = vmatprep.subr.mxu0 0.0
    %844 = vmatpush2.msra.mxu0 0.0
    %845 = vmatprep.subr.mxu0 0.0
    %846 = vmatpush2.msra.mxu0 0.0
    %847 = vmatprep.subr.mxu0 0.0
    %848 = vmatpush2.msra.mxu0 0.0
    %849 = vmatprep.subr.mxu0 0.0
    %850 = vmatpush2.msra.mxu0 0.0
    %851 = vmatprep.subr.mxu0 0.0
    %852 = vmatpush2.msra.mxu0 0.0
    %853 = vmatprep.subr.mxu0 0.0
    %854 = vmatpush2.msra.mxu0 0.0
    %855 = vmatprep.subr.mxu0 0.0
    %856 = vmatpush2.msra.mxu0 0.0
    %857 = vmatprep.subr.mxu0 0.0
    %858 = vmatpush2.msra.mxu0 0.0
    %859 = vmatprep.subr.mxu0 0.0
    %860 = vmatpush2.msra.mxu0 0.0
    %861 = vmatprep.subr.mxu0 0.0
    %862 = vmatpush2.msra.mxu0 0.0
    %863 = vmatprep.subr.mxu0 0.0
    %864 = vmatpush2.msra.mxu0 0.0
    %865 = vmatprep.mubr.f32.mxu0 0.0
    %866 = vmatmul.mubr.f32.gmra.mxu0 %v799
    %v867 = vpop.f32.mrf.mxu0
    %v868 = vadd.f32 0.0, %v867
    %v869 = vpop.f32.mrf.mxu0
    %870 = vdwg.mxu0
    %v871 = vadd.f32 %v629, %v868
    %872 = vrot.lane.b32.xlu0 %v124, 104
    %v873 = vpop.permute.xlu0 %872
    %874 = vrot.lane.b32.xlu0 %v134, 72
    %v875 = vpop.permute.xlu0 %874
    %v876 = vsel %vm155, %v873, 0
    %v878 = vsel %vm155, %v875, 0
    %880 = vmatprep.subr.mxu0 0.0
    %881 = vmatpush1.xpose.msra.mxu0 0.0
    %882 = vmatprep.subr.mxu0 0.0
    %883 = vmatpush1.xpose.msra.mxu0 0.0
    %884 = vmatprep.subr.mxu0 0.0
    %885 = vmatpush1.xpose.msra.mxu0 0.0
    %886 = vmatprep.subr.mxu0 0.0
    %887 = vmatpush1.xpose.msra.mxu0 0.0
    %888 = vmatprep.subr.mxu0 0.0
    %889 = vmatpush1.xpose.msra.mxu0 0.0
    %890 = vmatprep.subr.mxu0 0.0
    %891 = vmatpush1.xpose.msra.mxu0 0.0
    %892 = vmatprep.subr.mxu0 0.0
    %893 = vmatpush1.xpose.msra.mxu0 0.0
    %894 = vmatprep.subr.mxu0 0.0
    %895 = vmatpush1.xpose.msra.mxu0 0.0
    %896 = vmatprep.subr.mxu0 0.0
    %897 = vmatpush1.xpose.msra.mxu0 0.0
    %898 = vmatprep.subr.mxu0 0.0
    %899 = vmatpush1.xpose.msra.mxu0 0.0
    %900 = vmatprep.subr.mxu0 0.0
    %901 = vmatpush1.xpose.msra.mxu0 0.0
    %902 = vmatprep.subr.mxu0 0.0
    %903 = vmatpush1.xpose.msra.mxu0 0.0
    %904 = vmatprep.subr.mxu0 0.0
    %905 = vmatpush1.xpose.msra.mxu0 0.0
    %906 = vmatprep.subr.mxu0 0.0
    %907 = vmatpush1.xpose.msra.mxu0 0.0
    %908 = vmatprep.subr.mxu0 0.0
    %909 = vmatpush1.xpose.msra.mxu0 0.0
    %910 = vmatprep.subr.mxu0 0.0
    %911 = vmatpush1.xpose.msra.mxu0 %v878
    %912 = vmatprep.subr.mxu0 0.0
    %913 = vmatpush2.xpose.msra.mxu0 0.0
    %914 = vmatprep.subr.mxu0 0.0
    %915 = vmatpush2.xpose.msra.mxu0 0.0
    %916 = vmatprep.subr.mxu0 0.0
    %917 = vmatpush2.xpose.msra.mxu0 0.0
    %918 = vmatprep.subr.mxu0 0.0
    %919 = vmatpush2.xpose.msra.mxu0 0.0
    %920 = vmatprep.subr.mxu0 0.0
    %921 = vmatpush2.xpose.msra.mxu0 0.0
    %922 = vmatprep.subr.mxu0 0.0
    %923 = vmatpush2.xpose.msra.mxu0 0.0
    %924 = vmatprep.subr.mxu0 0.0
    %925 = vmatpush2.xpose.msra.mxu0 0.0
    %926 = vmatprep.subr.mxu0 0.0
    %927 = vmatpush2.xpose.msra.mxu0 0.0
    %928 = vmatprep.subr.mxu0 0.0
    %929 = vmatpush2.xpose.msra.mxu0 0.0
    %930 = vmatprep.subr.mxu0 0.0
    %931 = vmatpush2.xpose.msra.mxu0 0.0
    %932 = vmatprep.subr.mxu0 0.0
    %933 = vmatpush2.xpose.msra.mxu0 0.0
    %934 = vmatprep.subr.mxu0 0.0
    %935 = vmatpush2.xpose.msra.mxu0 0.0
    %936 = vmatprep.subr.mxu0 0.0
    %937 = vmatpush2.xpose.msra.mxu0 0.0
    %938 = vmatprep.subr.mxu0 0.0
    %939 = vmatpush2.xpose.msra.mxu0 0.0
    %940 = vmatprep.subr.mxu0 0.0
    %941 = vmatpush2.xpose.msra.mxu0 0.0
    %942 = vmatprep.subr.mxu0 0.0
    %943 = vmatpush2.xpose.msra.mxu0 0.0
    %944 = vmatprep.mubr.f32.mxu0 0.0
    %945 = vmatmul.mubr.f32.gmra.mxu0 %v876
    %v946 = vpop.f32.mrf.mxu0
    %v947 = vadd.f32 0.0, %v946
    %v948 = vpop.f32.mrf.mxu0
    %949 = vdwg.mxu0
    %v950 = vsel %vm155, %v947, -inf
    %951 = vmax.xlane.f32.xlu0 %v950
    %v952 = vpop.xlane.xlu0 %951
    %v953 = vsub.f32 %v947, %v952
    %v954 = vmul.f32 %v953, 1.442695
    %v955 = vpow.pop %v954
    %v956 = vsel %vm155, %v955, 0.0
    %957 = vadd.xlane.f32.xlu0 %v956
    %v958 = vpop.xlane.xlu0 %957
    %v959 = vrcp.pop %v958
    %v960 = vmul.f32 %v955, %v959
    %961 = vrot.lane.b32.xlu0 %v144, 40
    %v962 = vpop.permute.xlu0 %961
    %v965 = vsel %vm155, %v960, 0
    %967 = vmatprep.subr.mxu0 0.0
    %968 = vmatpush1.msra.mxu0 0.0
    %969 = vmatprep.subr.mxu0 0.0
    %970 = vmatpush1.msra.mxu0 0.0
    %971 = vmatprep.subr.mxu0 0.0
    %972 = vmatpush1.msra.mxu0 0.0
    %973 = vmatprep.subr.mxu0 0.0
    %974 = vmatpush1.msra.mxu0 0.0
    %975 = vmatprep.subr.mxu0 0.0
    %976 = vmatpush1.msra.mxu0 0.0
    %977 = vmatprep.subr.mxu0 0.0
    %978 = vmatpush1.msra.mxu0 0.0
    %979 = vmatprep.subr.mxu0 0.0
    %980 = vmatpush1.msra.mxu0 0.0
    %981 = vmatprep.subr.mxu0 0.0
    %982 = vmatpush1.msra.mxu0 0.0
    %983 = vmatprep.subr.mxu0 0.0
    %984 = vmatpush1.msra.mxu0 0.0
    %985 = vmatprep.subr.mxu0 0.0
    %986 = vmatpush1.msra.mxu0 0.0
    %987 = vmatprep.subr.mxu0 0.0
    %988 = vmatpush1.msra.mxu0 0.0
    %989 = vmatprep.subr.mxu0 0.0
    %990 = vmatpush1.msra.mxu0 0.0
    %991 = vmatprep.subr.mxu0 0.0
    %992 = vmatpush1.msra.mxu0 0.0
    %993 = vmatprep.subr.mxu0 0.0
    %994 = vmatpush1.msra.mxu0 0.0
    %995 = vmatprep.subr.mxu0 0.0
    %996 = vmatpush1.msra.mxu0 0.0
    %997 = vmatprep.subr.mxu0 0.0
    %998 = vmatpush1.msra.mxu0 %v962
    %999 = vmatprep.subr.mxu0 0.0
    %1000 = vmatpush2.msra.mxu0 0.0
    %1001 = vmatprep.subr.mxu0 0.0
    %1002 = vmatpush2.msra.mxu0 0.0
    %1003 = vmatprep.subr.mxu0 0.0
    %1004 = vmatpush2.msra.mxu0 0.0
    %1005 = vmatprep.subr.mxu0 0.0
    %1006 = vmatpush2.msra.mxu0 0.0
    %1007 = vmatprep.subr.mxu0 0.0
    %1008 = vmatpush2.msra.mxu0 0.0
    %1009 = vmatprep.subr.mxu0 0.0
    %1010 = vmatpush2.msra.mxu0 0.0
    %1011 = vmatprep.subr.mxu0 0.0
    %1012 = vmatpush2.msra.mxu0 0.0
    %1013 = vmatprep.subr.mxu0 0.0
    %1014 = vmatpush2.msra.mxu0 0.0
    %1015 = vmatprep.subr.mxu0 0.0
    %1016 = vmatpush2.msra.mxu0 0.0
    %1017 = vmatprep.subr.mxu0 0.0
    %1018 = vmatpush2.msra.mxu0 0.0
    %1019 = vmatprep.subr.mxu0 0.0
    %1020 = vmatpush2.msra.mxu0 0.0
    %1021 = vmatprep.subr.mxu0 0.0
    %1022 = vmatpush2.msra.mxu0 0.0
    %1023 = vmatprep.subr.mxu0 0.0
    %1024 = vmatpush2.msra.mxu0 0.0
    %1025 = vmatprep.subr.mxu0 0.0
    %1026 = vmatpush2.msra.mxu0 0.0
    %1027 = vmatprep.subr.mxu0 0.0
    %1028 = vmatpush2.msra.mxu0 0.0
    %1029 = vmatprep.subr.mxu0 0.0
    %1030 = vmatpush2.msra.mxu0 0.0
    %1031 = vmatprep.mubr.f32.mxu0 0.0
    %1032 = vmatmul.mubr.f32.gmra.mxu0 %v965
    %v1033 = vpop.f32.mrf.mxu0
    %v1034 = vadd.f32 0.0, %v1033
    %v1035 = vpop.f32.mrf.mxu0
    %1036 = vdwg.mxu0
    %v1037 = vld [vmem:[%s3 + $0x18] sm:$0xff]
    %v1039 = vsel %vm155, %v1034, 0
    %1041 = vmatprep.subr.mxu0 0.0
    %1042 = vmatpush1.msra.mxu0 0.0
    %1043 = vmatprep.subr.mxu0 0.0
    %1044 = vmatpush1.msra.mxu0 0.0
    %1045 = vmatprep.subr.mxu0 0.0
    %1046 = vmatpush1.msra.mxu0 0.0
    %1047 = vmatprep.subr.mxu0 0.0
    %1048 = vmatpush1.msra.mxu0 0.0
    %1049 = vmatprep.subr.mxu0 0.0
    %1050 = vmatpush1.msra.mxu0 0.0
    %1051 = vmatprep.subr.mxu0 0.0
    %1052 = vmatpush1.msra.mxu0 0.0
    %1053 = vmatprep.subr.mxu0 0.0
    %1054 = vmatpush1.msra.mxu0 0.0
    %1055 = vmatprep.subr.mxu0 0.0
    %1056 = vmatpush1.msra.mxu0 0.0
    %1057 = vmatprep.subr.mxu0 0.0
    %1058 = vmatpush1.msra.mxu0 0.0
    %1059 = vmatprep.subr.mxu0 0.0
    %1060 = vmatpush1.msra.mxu0 0.0
    %1061 = vmatprep.subr.mxu0 0.0
    %1062 = vmatpush1.msra.mxu0 0.0
    %1063 = vmatprep.subr.mxu0 0.0
    %1064 = vmatpush1.msra.mxu0 0.0
    %1065 = vmatprep.subr.mxu0 0.0
    %1066 = vmatpush1.msra.mxu0 0.0
    %1067 = vmatprep.subr.mxu0 0.0
    %1068 = vmatpush1.msra.mxu0 0.0
    %1069 = vmatprep.subr.mxu0 0.0
    %1070 = vmatpush1.msra.mxu0 0.0
    %1071 = vmatprep.subr.mxu0 0.0
    %1072 = vmatpush1.msra.mxu0 %v1037
    %1073 = vmatprep.subr.mxu0 0.0
    %1074 = vmatpush2.msra.mxu0 0.0
    %1075 = vmatprep.subr.mxu0 0.0
    %1076 = vmatpush2.msra.mxu0 0.0
    %1077 = vmatprep.subr.mxu0 0.0
    %1078 = vmatpush2.msra.mxu0 0.0
    %1079 = vmatprep.subr.mxu0 0.0
    %1080 = vmatpush2.msra.mxu0 0.0
    %1081 = vmatprep.subr.mxu0 0.0
    %1082 = vmatpush2.msra.mxu0 0.0
    %1083 = vmatprep.subr.mxu0 0.0
    %1084 = vmatpush2.msra.mxu0 0.0
    %1085 = vmatprep.subr.mxu0 0.0
    %1086 = vmatpush2.msra.mxu0 0.0
    %1087 = vmatprep.subr.mxu0 0.0
    %1088 = vmatpush2.msra.mxu0 0.0
    %1089 = vmatprep.subr.mxu0 0.0
    %1090 = vmatpush2.msra.mxu0 0.0
    %1091 = vmatprep.subr.mxu0 0.0
    %1092 = vmatpush2.msra.mxu0 0.0
    %1093 = vmatprep.subr.mxu0 0.0
    %1094 = vmatpush2.msra.mxu0 0.0
    %1095 = vmatprep.subr.mxu0 0.0
    %1096 = vmatpush2.msra.mxu0 0.0
    %1097 = vmatprep.subr.mxu0 0.0
    %1098 = vmatpush2.msra.mxu0 0.0
    %1099 = vmatprep.subr.mxu0 0.0
    %1100 = vmatpush2.msra.mxu0 0.0
    %1101 = vmatprep.subr.mxu0 0.0
    %1102 = vmatpush2.msra.mxu0 0.0
    %1103 = vmatprep.subr.mxu0 0.0
    %1104 = vmatpush2.msra.mxu0 0.0
    %1105 = vmatprep.mubr.f32.mxu0 0.0
    %1106 = vmatmul.mubr.f32.gmra.mxu0 %v1039
    %v1107 = vpop.f32.mrf.mxu0
    %v1108 = vadd.f32 0.0, %v1107
    %v1109 = vpop.f32.mrf.mxu0
    %1110 = vdwg.mxu0
    %v1111 = vadd.f32 %v871, %v1108
    %v1112 = vld [vmem:[%s4] sm:$0x1]
    %v1114 = vlaneseq
    %v1115 = vshrl.u32 %v1114, 7
    %v1116 = vsub.s32 0, %v1115
    %v1117 = vrot.slane %v1112, %v1116
    %v1119 = vadd.f32 %v1111, %v1117
    %1120 = vst.msk [vmem:[#allocation2] sm:$0xff] %vm38, %v1119
    %1122 = vrot.lane.b32.xlu0 %v139, 96
    %v1123 = vpop.permute.xlu0 %1122
    %v1125 = vsel %vm155, %v129, 0
    %v1127 = vsel %vm155, %v1123, 0
    %1129 = vmatprep.subr.mxu0 0.0
    %1130 = vmatpush1.xpose.msra.mxu0 0.0
    %1131 = vmatprep.subr.mxu0 0.0
    %1132 = vmatpush1.xpose.msra.mxu0 0.0
    %1133 = vmatprep.subr.mxu0 0.0
    %1134 = vmatpush1.xpose.msra.mxu0 0.0
    %1135 = vmatprep.subr.mxu0 0.0
    %1136 = vmatpush1.xpose.msra.mxu0 0.0
    %1137 = vmatprep.subr.mxu0 0.0
    %1138 = vmatpush1.xpose.msra.mxu0 0.0
    %1139 = vmatprep.subr.mxu0 0.0
    %1140 = vmatpush1.xpose.msra.mxu0 0.0
    %1141 = vmatprep.subr.mxu0 0.0
    %1142 = vmatpush1.xpose.msra.mxu0 0.0
    %1143 = vmatprep.subr.mxu0 0.0
    %1144 = vmatpush1.xpose.msra.mxu0 0.0
    %1145 = vmatprep.subr.mxu0 0.0
    %1146 = vmatpush1.xpose.msra.mxu0 0.0
    %1147 = vmatprep.subr.mxu0 0.0
    %1148 = vmatpush1.xpose.msra.mxu0 0.0
    %1149 = vmatprep.subr.mxu0 0.0
    %1150 = vmatpush1.xpose.msra.mxu0 0.0
    %1151 = vmatprep.subr.mxu0 0.0
    %1152 = vmatpush1.xpose.msra.mxu0 0.0
    %1153 = vmatprep.subr.mxu0 0.0
    %1154 = vmatpush1.xpose.msra.mxu0 0.0
    %1155 = vmatprep.subr.mxu0 0.0
    %1156 = vmatpush1.xpose.msra.mxu0 0.0
    %1157 = vmatprep.subr.mxu0 0.0
    %1158 = vmatpush1.xpose.msra.mxu0 0.0
    %1159 = vmatprep.subr.mxu0 0.0
    %1160 = vmatpush1.xpose.msra.mxu0 %v1127
    %1161 = vmatprep.subr.mxu0 0.0
    %1162 = vmatpush2.xpose.msra.mxu0 0.0
    %1163 = vmatprep.subr.mxu0 0.0
    %1164 = vmatpush2.xpose.msra.mxu0 0.0
    %1165 = vmatprep.subr.mxu0 0.0
    %1166 = vmatpush2.xpose.msra.mxu0 0.0
    %1167 = vmatprep.subr.mxu0 0.0
    %1168 = vmatpush2.xpose.msra.mxu0 0.0
    %1169 = vmatprep.subr.mxu0 0.0
    %1170 = vmatpush2.xpose.msra.mxu0 0.0
    %1171 = vmatprep.subr.mxu0 0.0
    %1172 = vmatpush2.xpose.msra.mxu0 0.0
    %1173 = vmatprep.subr.mxu0 0.0
    %1174 = vmatpush2.xpose.msra.mxu0 0.0
    %1175 = vmatprep.subr.mxu0 0.0
    %1176 = vmatpush2.xpose.msra.mxu0 0.0
    %1177 = vmatprep.subr.mxu0 0.0
    %1178 = vmatpush2.xpose.msra.mxu0 0.0
    %1179 = vmatprep.subr.mxu0 0.0
    %1180 = vmatpush2.xpose.msra.mxu0 0.0
    %1181 = vmatprep.subr.mxu0 0.0
    %1182 = vmatpush2.xpose.msra.mxu0 0.0
    %1183 = vmatprep.subr.mxu0 0.0
    %1184 = vmatpush2.xpose.msra.mxu0 0.0
    %1185 = vmatprep.subr.mxu0 0.0
    %1186 = vmatpush2.xpose.msra.mxu0 0.0
    %1187 = vmatprep.subr.mxu0 0.0
    %1188 = vmatpush2.xpose.msra.mxu0 0.0
    %1189 = vmatprep.subr.mxu0 0.0
    %1190 = vmatpush2.xpose.msra.mxu0 0.0
    %1191 = vmatprep.subr.mxu0 0.0
    %1192 = vmatpush2.xpose.msra.mxu0 0.0
    %1193 = vmatprep.mubr.f32.mxu0 0.0
    %1194 = vmatmul.mubr.f32.gmra.mxu0 %v1125
    %v1195 = vpop.f32.mrf.mxu0
    %v1196 = vadd.f32 0.0, %v1195
    %v1197 = vpop.f32.mrf.mxu0
    %1198 = vdwg.mxu0
    %v1199 = vsel %vm155, %v1196, -inf
    %1200 = vmax.xlane.f32.xlu0 %v1199
    %v1201 = vpop.xlane.xlu0 %1200
    %v1202 = vsub.f32 %v1196, %v1201
    %v1203 = vmul.f32 %v1202, 1.442695
    %v1204 = vpow.pop %v1203
    %v1205 = vsel %vm155, %v1204, 0.0
    %1206 = vadd.xlane.f32.xlu0 %v1205
    %v1207 = vpop.xlane.xlu0 %1206
    %v1208 = vrcp.pop %v1207
    %v1209 = vmul.f32 %v1204, %v1208
    %1211 = vrot.lane.b32.xlu0 %v149, 64
    %v1212 = vpop.permute.xlu0 %1211
    %v1215 = vsel %vm155, %v1209, 0
    %1217 = vmatprep.subr.mxu0 0.0
    %1218 = vmatpush1.msra.mxu0 0.0
    %1219 = vmatprep.subr.mxu0 0.0
    %1220 = vmatpush1.msra.mxu0 0.0
    %1221 = vmatprep.subr.mxu0 0.0
    %1222 = vmatpush1.msra.mxu0 0.0
    %1223 = vmatprep.subr.mxu0 0.0
    %1224 = vmatpush1.msra.mxu0 0.0
    %1225 = vmatprep.subr.mxu0 0.0
    %1226 = vmatpush1.msra.mxu0 0.0
    %1227 = vmatprep.subr.mxu0 0.0
    %1228 = vmatpush1.msra.mxu0 0.0
    %1229 = vmatprep.subr.mxu0 0.0
    %1230 = vmatpush1.msra.mxu0 0.0
    %1231 = vmatprep.subr.mxu0 0.0
    %1232 = vmatpush1.msra.mxu0 0.0
    %1233 = vmatprep.subr.mxu0 0.0
    %1234 = vmatpush1.msra.mxu0 0.0
    %1235 = vmatprep.subr.mxu0 0.0
    %1236 = vmatpush1.msra.mxu0 0.0
    %1237 = vmatprep.subr.mxu0 0.0
    %1238 = vmatpush1.msra.mxu0 0.0
    %1239 = vmatprep.subr.mxu0 0.0
    %1240 = vmatpush1.msra.mxu0 0.0
    %1241 = vmatprep.subr.mxu0 0.0
    %1242 = vmatpush1.msra.mxu0 0.0
    %1243 = vmatprep.subr.mxu0 0.0
    %1244 = vmatpush1.msra.mxu0 0.0
    %1245 = vmatprep.subr.mxu0 0.0
    %1246 = vmatpush1.msra.mxu0 0.0
    %1247 = vmatprep.subr.mxu0 0.0
    %1248 = vmatpush1.msra.mxu0 %v1212
    %1249 = vmatprep.subr.mxu0 0.0
    %1250 = vmatpush2.msra.mxu0 0.0
    %1251 = vmatprep.subr.mxu0 0.0
    %1252 = vmatpush2.msra.mxu0 0.0
    %1253 = vmatprep.subr.mxu0 0.0
    %1254 = vmatpush2.msra.mxu0 0.0
    %1255 = vmatprep.subr.mxu0 0.0
    %1256 = vmatpush2.msra.mxu0 0.0
    %1257 = vmatprep.subr.mxu0 0.0
    %1258 = vmatpush2.msra.mxu0 0.0
    %1259 = vmatprep.subr.mxu0 0.0
    %1260 = vmatpush2.msra.mxu0 0.0
    %1261 = vmatprep.subr.mxu0 0.0
    %1262 = vmatpush2.msra.mxu0 0.0
    %1263 = vmatprep.subr.mxu0 0.0
    %1264 = vmatpush2.msra.mxu0 0.0
    %1265 = vmatprep.subr.mxu0 0.0
    %1266 = vmatpush2.msra.mxu0 0.0
    %1267 = vmatprep.subr.mxu0 0.0
    %1268 = vmatpush2.msra.mxu0 0.0
    %1269 = vmatprep.subr.mxu0 0.0
    %1270 = vmatpush2.msra.mxu0 0.0
    %1271 = vmatprep.subr.mxu0 0.0
    %1272 = vmatpush2.msra.mxu0 0.0
    %1273 = vmatprep.subr.mxu0 0.0
    %1274 = vmatpush2.msra.mxu0 0.0
    %1275 = vmatprep.subr.mxu0 0.0
    %1276 = vmatpush2.msra.mxu0 0.0
    %1277 = vmatprep.subr.mxu0 0.0
    %1278 = vmatpush2.msra.mxu0 0.0
    %1279 = vmatprep.subr.mxu0 0.0
    %1280 = vmatpush2.msra.mxu0 0.0
    %1281 = vmatprep.mubr.f32.mxu0 0.0
    %1282 = vmatmul.mubr.f32.gmra.mxu0 %v1215
    %v1283 = vpop.f32.mrf.mxu0
    %v1284 = vadd.f32 0.0, %v1283
    %v1285 = vpop.f32.mrf.mxu0
    %1286 = vdwg.mxu0
    %v1287 = vld [vmem:[%s3] sm:$0xff]
    %1288 = vrot.lane.b32.xlu0 %v129, 120
    %v1289 = vpop.permute.xlu0 %1288
    %1290 = vrot.lane.b32.xlu0 %v139, 88
    %v1291 = vpop.permute.xlu0 %1290
    %v1292 = vsel %vm155, %v1289, 0
    %v1294 = vsel %vm155, %v1291, 0
    %1296 = vmatprep.subr.mxu0 0.0
    %1297 = vmatpush1.xpose.msra.mxu0 0.0
    %1298 = vmatprep.subr.mxu0 0.0
    %1299 = vmatpush1.xpose.msra.mxu0 0.0
    %1300 = vmatprep.subr.mxu0 0.0
    %1301 = vmatpush1.xpose.msra.mxu0 0.0
    %1302 = vmatprep.subr.mxu0 0.0
    %1303 = vmatpush1.xpose.msra.mxu0 0.0
    %1304 = vmatprep.subr.mxu0 0.0
    %1305 = vmatpush1.xpose.msra.mxu0 0.0
    %1306 = vmatprep.subr.mxu0 0.0
    %1307 = vmatpush1.xpose.msra.mxu0 0.0
    %1308 = vmatprep.subr.mxu0 0.0
    %1309 = vmatpush1.xpose.msra.mxu0 0.0
    %1310 = vmatprep.subr.mxu0 0.0
    %1311 = vmatpush1.xpose.msra.mxu0 0.0
    %1312 = vmatprep.subr.mxu0 0.0
    %1313 = vmatpush1.xpose.msra.mxu0 0.0
    %1314 = vmatprep.subr.mxu0 0.0
    %1315 = vmatpush1.xpose.msra.mxu0 0.0
    %1316 = vmatprep.subr.mxu0 0.0
    %1317 = vmatpush1.xpose.msra.mxu0 0.0
    %1318 = vmatprep.subr.mxu0 0.0
    %1319 = vmatpush1.xpose.msra.mxu0 0.0
    %1320 = vmatprep.subr.mxu0 0.0
    %1321 = vmatpush1.xpose.msra.mxu0 0.0
    %1322 = vmatprep.subr.mxu0 0.0
    %1323 = vmatpush1.xpose.msra.mxu0 0.0
    %1324 = vmatprep.subr.mxu0 0.0
    %1325 = vmatpush1.xpose.msra.mxu0 0.0
    %1326 = vmatprep.subr.mxu0 0.0
    %1327 = vmatpush1.xpose.msra.mxu0 %v1294
    %1328 = vmatprep.subr.mxu0 0.0
    %1329 = vmatpush2.xpose.msra.mxu0 0.0
    %1330 = vmatprep.subr.mxu0 0.0
    %1331 = vmatpush2.xpose.msra.mxu0 0.0
    %1332 = vmatprep.subr.mxu0 0.0
    %1333 = vmatpush2.xpose.msra.mxu0 0.0
    %1334 = vmatprep.subr.mxu0 0.0
    %1335 = vmatpush2.xpose.msra.mxu0 0.0
    %1336 = vmatprep.subr.mxu0 0.0
    %1337 = vmatpush2.xpose.msra.mxu0 0.0
    %1338 = vmatprep.subr.mxu0 0.0
    %1339 = vmatpush2.xpose.msra.mxu0 0.0
    %1340 = vmatprep.subr.mxu0 0.0
    %1341 = vmatpush2.xpose.msra.mxu0 0.0
    %1342 = vmatprep.subr.mxu0 0.0
    %1343 = vmatpush2.xpose.msra.mxu0 0.0
    %1344 = vmatprep.subr.mxu0 0.0
    %1345 = vmatpush2.xpose.msra.mxu0 0.0
    %1346 = vmatprep.subr.mxu0 0.0
    %1347 = vmatpush2.xpose.msra.mxu0 0.0
    %1348 = vmatprep.subr.mxu0 0.0
    %1349 = vmatpush2.xpose.msra.mxu0 0.0
    %1350 = vmatprep.subr.mxu0 0.0
    %1351 = vmatpush2.xpose.msra.mxu0 0.0
    %1352 = vmatprep.subr.mxu0 0.0
    %1353 = vmatpush2.xpose.msra.mxu0 0.0
    %1354 = vmatprep.subr.mxu0 0.0
    %1355 = vmatpush2.xpose.msra.mxu0 0.0
    %1356 = vmatprep.subr.mxu0 0.0
    %1357 = vmatpush2.xpose.msra.mxu0 0.0
    %1358 = vmatprep.subr.mxu0 0.0
    %1359 = vmatpush2.xpose.msra.mxu0 0.0
    %1360 = vmatprep.mubr.f32.mxu0 0.0
    %1361 = vmatmul.mubr.f32.gmra.mxu0 %v1292
    %v1362 = vpop.f32.mrf.mxu0
    %v1363 = vadd.f32 0.0, %v1362
    %v1364 = vpop.f32.mrf.mxu0
    %1365 = vdwg.mxu0
    %v1366 = vsel %vm155, %v1363, -inf
    %1367 = vmax.xlane.f32.xlu0 %v1366
    %v1368 = vpop.xlane.xlu0 %1367
    %v1369 = vsub.f32 %v1363, %v1368
    %v1370 = vmul.f32 %v1369, 1.442695
    %v1371 = vpow.pop %v1370
    %v1372 = vsel %vm155, %v1371, 0.0
    %1373 = vadd.xlane.f32.xlu0 %v1372
    %v1374 = vpop.xlane.xlu0 %1373
    %v1375 = vrcp.pop %v1374
    %v1376 = vmul.f32 %v1371, %v1375
    %1377 = vrot.lane.b32.xlu0 %v149, 56
    %v1378 = vpop.permute.xlu0 %1377
    %v1381 = vsel %vm155, %v1376, 0
    %1383 = vmatprep.subr.mxu0 0.0
    %1384 = vmatpush1.msra.mxu0 0.0
    %1385 = vmatprep.subr.mxu0 0.0
    %1386 = vmatpush1.msra.mxu0 0.0
    %1387 = vmatprep.subr.mxu0 0.0
    %1388 = vmatpush1.msra.mxu0 0.0
    %1389 = vmatprep.subr.mxu0 0.0
    %1390 = vmatpush1.msra.mxu0 0.0
    %1391 = vmatprep.subr.mxu0 0.0
    %1392 = vmatpush1.msra.mxu0 0.0
    %1393 = vmatprep.subr.mxu0 0.0
    %1394 = vmatpush1.msra.mxu0 0.0
    %1395 = vmatprep.subr.mxu0 0.0
    %1396 = vmatpush1.msra.mxu0 0.0
    %1397 = vmatprep.subr.mxu0 0.0
    %1398 = vmatpush1.msra.mxu0 0.0
    %1399 = vmatprep.subr.mxu0 0.0
    %1400 = vmatpush1.msra.mxu0 0.0
    %1401 = vmatprep.subr.mxu0 0.0
    %1402 = vmatpush1.msra.mxu0 0.0
    %1403 = vmatprep.subr.mxu0 0.0
    %1404 = vmatpush1.msra.mxu0 0.0
    %1405 = vmatprep.subr.mxu0 0.0
    %1406 = vmatpush1.msra.mxu0 0.0
    %1407 = vmatprep.subr.mxu0 0.0
    %1408 = vmatpush1.msra.mxu0 0.0
    %1409 = vmatprep.subr.mxu0 0.0
    %1410 = vmatpush1.msra.mxu0 0.0
    %1411 = vmatprep.subr.mxu0 0.0
    %1412 = vmatpush1.msra.mxu0 0.0
    %1413 = vmatprep.subr.mxu0 0.0
    %1414 = vmatpush1.msra.mxu0 %v1378
    %1415 = vmatprep.subr.mxu0 0.0
    %1416 = vmatpush2.msra.mxu0 0.0
    %1417 = vmatprep.subr.mxu0 0.0
    %1418 = vmatpush2.msra.mxu0 0.0
    %1419 = vmatprep.subr.mxu0 0.0
    %1420 = vmatpush2.msra.mxu0 0.0
    %1421 = vmatprep.subr.mxu0 0.0
    %1422 = vmatpush2.msra.mxu0 0.0
    %1423 = vmatprep.subr.mxu0 0.0
    %1424 = vmatpush2.msra.mxu0 0.0
    %1425 = vmatprep.subr.mxu0 0.0
    %1426 = vmatpush2.msra.mxu0 0.0
    %1427 = vmatprep.subr.mxu0 0.0
    %1428 = vmatpush2.msra.mxu0 0.0
    %1429 = vmatprep.subr.mxu0 0.0
    %1430 = vmatpush2.msra.mxu0 0.0
    %1431 = vmatprep.subr.mxu0 0.0
    %1432 = vmatpush2.msra.mxu0 0.0
    %1433 = vmatprep.subr.mxu0 0.0
    %1434 = vmatpush2.msra.mxu0 0.0
    %1435 = vmatprep.subr.mxu0 0.0
    %1436 = vmatpush2.msra.mxu0 0.0
    %1437 = vmatprep.subr.mxu0 0.0
    %1438 = vmatpush2.msra.mxu0 0.0
    %1439 = vmatprep.subr.mxu0 0.0
    %1440 = vmatpush2.msra.mxu0 0.0
    %1441 = vmatprep.subr.mxu0 0.0
    %1442 = vmatpush2.msra.mxu0 0.0
    %1443 = vmatprep.subr.mxu0 0.0
    %1444 = vmatpush2.msra.mxu0 0.0
    %1445 = vmatprep.subr.mxu0 0.0
    %1446 = vmatpush2.msra.mxu0 0.0
    %1447 = vmatprep.mubr.f32.mxu0 0.0
    %1448 = vmatmul.mubr.f32.gmra.mxu0 %v1381
    %v1449 = vpop.f32.mrf.mxu0
    %v1450 = vadd.f32 0.0, %v1449
    %v1451 = vpop.f32.mrf.mxu0
    %1452 = vdwg.mxu0
    %v1453 = vld [vmem:[%s3 + $0x8] sm:$0xff]
    %v1455 = vsel %vm155, %v1450, 0
    %1457 = vmatprep.subr.mxu0 0.0
    %1458 = vmatpush1.msra.mxu0 0.0
    %1459 = vmatprep.subr.mxu0 0.0
    %1460 = vmatpush1.msra.mxu0 0.0
    %1461 = vmatprep.subr.mxu0 0.0
    %1462 = vmatpush1.msra.mxu0 0.0
    %1463 = vmatprep.subr.mxu0 0.0
    %1464 = vmatpush1.msra.mxu0 0.0
    %1465 = vmatprep.subr.mxu0 0.0
    %1466 = vmatpush1.msra.mxu0 0.0
    %1467 = vmatprep.subr.mxu0 0.0
    %1468 = vmatpush1.msra.mxu0 0.0
    %1469 = vmatprep.subr.mxu0 0.0
    %1470 = vmatpush1.msra.mxu0 0.0
    %1471 = vmatprep.subr.mxu0 0.0
    %1472 = vmatpush1.msra.mxu0 0.0
    %1473 = vmatprep.subr.mxu0 0.0
    %1474 = vmatpush1.msra.mxu0 0.0
    %1475 = vmatprep.subr.mxu0 0.0
    %1476 = vmatpush1.msra.mxu0 0.0
    %1477 = vmatprep.subr.mxu0 0.0
    %1478 = vmatpush1.msra.mxu0 0.0
    %1479 = vmatprep.subr.mxu0 0.0
    %1480 = vmatpush1.msra.mxu0 0.0
    %1481 = vmatprep.subr.mxu0 0.0
    %1482 = vmatpush1.msra.mxu0 0.0
    %1483 = vmatprep.subr.mxu0 0.0
    %1484 = vmatpush1.msra.mxu0 0.0
    %1485 = vmatprep.subr.mxu0 0.0
    %1486 = vmatpush1.msra.mxu0 0.0
    %1487 = vmatprep.subr.mxu0 0.0
    %1488 = vmatpush1.msra.mxu0 %v1453
    %1489 = vmatprep.subr.mxu0 0.0
    %1490 = vmatpush2.msra.mxu0 0.0
    %1491 = vmatprep.subr.mxu0 0.0
    %1492 = vmatpush2.msra.mxu0 0.0
    %1493 = vmatprep.subr.mxu0 0.0
    %1494 = vmatpush2.msra.mxu0 0.0
    %1495 = vmatprep.subr.mxu0 0.0
    %1496 = vmatpush2.msra.mxu0 0.0
    %1497 = vmatprep.subr.mxu0 0.0
    %1498 = vmatpush2.msra.mxu0 0.0
    %1499 = vmatprep.subr.mxu0 0.0
    %1500 = vmatpush2.msra.mxu0 0.0
    %1501 = vmatprep.subr.mxu0 0.0
    %1502 = vmatpush2.msra.mxu0 0.0
    %1503 = vmatprep.subr.mxu0 0.0
    %1504 = vmatpush2.msra.mxu0 0.0
    %1505 = vmatprep.subr.mxu0 0.0
    %1506 = vmatpush2.msra.mxu0 0.0
    %1507 = vmatprep.subr.mxu0 0.0
    %1508 = vmatpush2.msra.mxu0 0.0
    %1509 = vmatprep.subr.mxu0 0.0
    %1510 = vmatpush2.msra.mxu0 0.0
    %1511 = vmatprep.subr.mxu0 0.0
    %1512 = vmatpush2.msra.mxu0 0.0
    %1513 = vmatprep.subr.mxu0 0.0
    %1514 = vmatpush2.msra.mxu0 0.0
    %1515 = vmatprep.subr.mxu0 0.0
    %1516 = vmatpush2.msra.mxu0 0.0
    %1517 = vmatprep.subr.mxu0 0.0
    %1518 = vmatpush2.msra.mxu0 0.0
    %1519 = vmatprep.subr.mxu0 0.0
    %1520 = vmatpush2.msra.mxu0 0.0
    %1521 = vmatprep.mubr.f32.mxu0 0.0
    %1522 = vmatmul.mubr.f32.gmra.mxu0 %v1455
    %v1523 = vpop.f32.mrf.mxu0
    %v1524 = vadd.f32 0.0, %v1523
    %v1525 = vpop.f32.mrf.mxu0
    %1526 = vdwg.mxu0
    %v1528 = vsel %vm155, %v1284, 0
    %1530 = vmatprep.subr.mxu0 0.0
    %1531 = vmatpush1.msra.mxu0 0.0
    %1532 = vmatprep.subr.mxu0 0.0
    %1533 = vmatpush1.msra.mxu0 0.0
    %1534 = vmatprep.subr.mxu0 0.0
    %1535 = vmatpush1.msra.mxu0 0.0
    %1536 = vmatprep.subr.mxu0 0.0
    %1537 = vmatpush1.msra.mxu0 0.0
    %1538 = vmatprep.subr.mxu0 0.0
    %1539 = vmatpush1.msra.mxu0 0.0
    %1540 = vmatprep.subr.mxu0 0.0
    %1541 = vmatpush1.msra.mxu0 0.0
    %1542 = vmatprep.subr.mxu0 0.0
    %1543 = vmatpush1.msra.mxu0 0.0
    %1544 = vmatprep.subr.mxu0 0.0
    %1545 = vmatpush1.msra.mxu0 0.0
    %1546 = vmatprep.subr.mxu0 0.0
    %1547 = vmatpush1.msra.mxu0 0.0
    %1548 = vmatprep.subr.mxu0 0.0
    %1549 = vmatpush1.msra.mxu0 0.0
    %1550 = vmatprep.subr.mxu0 0.0
    %1551 = vmatpush1.msra.mxu0 0.0
    %1552 = vmatprep.subr.mxu0 0.0
    %1553 = vmatpush1.msra.mxu0 0.0
    %1554 = vmatprep.subr.mxu0 0.0
    %1555 = vmatpush1.msra.mxu0 0.0
    %1556 = vmatprep.subr.mxu0 0.0
    %1557 = vmatpush1.msra.mxu0 0.0
    %1558 = vmatprep.subr.mxu0 0.0
    %1559 = vmatpush1.msra.mxu0 0.0
    %1560 = vmatprep.subr.mxu0 0.0
    %1561 = vmatpush1.msra.mxu0 %v1287
    %1562 = vmatprep.subr.mxu0 0.0
    %1563 = vmatpush2.msra.mxu0 0.0
    %1564 = vmatprep.subr.mxu0 0.0
    %1565 = vmatpush2.msra.mxu0 0.0
    %1566 = vmatprep.subr.mxu0 0.0
    %1567 = vmatpush2.msra.mxu0 0.0
    %1568 = vmatprep.subr.mxu0 0.0
    %1569 = vmatpush2.msra.mxu0 0.0
    %1570 = vmatprep.subr.mxu0 0.0
    %1571 = vmatpush2.msra.mxu0 0.0
    %1572 = vmatprep.subr.mxu0 0.0
    %1573 = vmatpush2.msra.mxu0 0.0
    %1574 = vmatprep.subr.mxu0 0.0
    %1575 = vmatpush2.msra.mxu0 0.0
    %1576 = vmatprep.subr.mxu0 0.0
    %1577 = vmatpush2.msra.mxu0 0.0
    %1578 = vmatprep.subr.mxu0 0.0
    %1579 = vmatpush2.msra.mxu0 0.0
    %1580 = vmatprep.subr.mxu0 0.0
    %1581 = vmatpush2.msra.mxu0 0.0
    %1582 = vmatprep.subr.mxu0 0.0
    %1583 = vmatpush2.msra.mxu0 0.0
    %1584 = vmatprep.subr.mxu0 0.0
    %1585 = vmatpush2.msra.mxu0 0.0
    %1586 = vmatprep.subr.mxu0 0.0
    %1587 = vmatpush2.msra.mxu0 0.0
    %1588 = vmatprep.subr.mxu0 0.0
    %1589 = vmatpush2.msra.mxu0 0.0
    %1590 = vmatprep.subr.mxu0 0.0
    %1591 = vmatpush2.msra.mxu0 0.0
    %1592 = vmatprep.subr.mxu0 0.0
    %1593 = vmatpush2.msra.mxu0 0.0
    %1594 = vmatprep.mubr.f32.mxu0 0.0
    %1595 = vmatmul.mubr.f32.gmra.mxu0 %v1528
    %v1596 = vpop.f32.mrf.mxu0
    %v1597 = vadd.f32 %v1524, %v1596
    %v1598 = vpop.f32.mrf.mxu0
    %1599 = vdwg.mxu0
    %1600 = vrot.lane.b32.xlu0 %v129, 112
    %v1601 = vpop.permute.xlu0 %1600
    %1602 = vrot.lane.b32.xlu0 %v139, 80
    %v1603 = vpop.permute.xlu0 %1602
    %v1604 = vsel %vm155, %v1601, 0
    %v1606 = vsel %vm155, %v1603, 0
    %1608 = vmatprep.subr.mxu0 0.0
    %1609 = vmatpush1.xpose.msra.mxu0 0.0
    %1610 = vmatprep.subr.mxu0 0.0
    %1611 = vmatpush1.xpose.msra.mxu0 0.0
    %1612 = vmatprep.subr.mxu0 0.0
    %1613 = vmatpush1.xpose.msra.mxu0 0.0
    %1614 = vmatprep.subr.mxu0 0.0
    %1615 = vmatpush1.xpose.msra.mxu0 0.0
    %1616 = vmatprep.subr.mxu0 0.0
    %1617 = vmatpush1.xpose.msra.mxu0 0.0
    %1618 = vmatprep.subr.mxu0 0.0
    %1619 = vmatpush1.xpose.msra.mxu0 0.0
    %1620 = vmatprep.subr.mxu0 0.0
    %1621 = vmatpush1.xpose.msra.mxu0 0.0
    %1622 = vmatprep.subr.mxu0 0.0
    %1623 = vmatpush1.xpose.msra.mxu0 0.0
    %1624 = vmatprep.subr.mxu0 0.0
    %1625 = vmatpush1.xpose.msra.mxu0 0.0
    %1626 = vmatprep.subr.mxu0 0.0
    %1627 = vmatpush1.xpose.msra.mxu0 0.0
    %1628 = vmatprep.subr.mxu0 0.0
    %1629 = vmatpush1.xpose.msra.mxu0 0.0
    %1630 = vmatprep.subr.mxu0 0.0
    %1631 = vmatpush1.xpose.msra.mxu0 0.0
    %1632 = vmatprep.subr.mxu0 0.0
    %1633 = vmatpush1.xpose.msra.mxu0 0.0
    %1634 = vmatprep.subr.mxu0 0.0
    %1635 = vmatpush1.xpose.msra.mxu0 0.0
    %1636 = vmatprep.subr.mxu0 0.0
    %1637 = vmatpush1.xpose.msra.mxu0 0.0
    %1638 = vmatprep.subr.mxu0 0.0
    %1639 = vmatpush1.xpose.msra.mxu0 %v1606
    %1640 = vmatprep.subr.mxu0 0.0
    %1641 = vmatpush2.xpose.msra.mxu0 0.0
    %1642 = vmatprep.subr.mxu0 0.0
    %1643 = vmatpush2.xpose.msra.mxu0 0.0
    %1644 = vmatprep.subr.mxu0 0.0
    %1645 = vmatpush2.xpose.msra.mxu0 0.0
    %1646 = vmatprep.subr.mxu0 0.0
    %1647 = vmatpush2.xpose.msra.mxu0 0.0
    %1648 = vmatprep.subr.mxu0 0.0
    %1649 = vmatpush2.xpose.msra.mxu0 0.0
    %1650 = vmatprep.subr.mxu0 0.0
    %1651 = vmatpush2.xpose.msra.mxu0 0.0
    %1652 = vmatprep.subr.mxu0 0.0
    %1653 = vmatpush2.xpose.msra.mxu0 0.0
    %1654 = vmatprep.subr.mxu0 0.0
    %1655 = vmatpush2.xpose.msra.mxu0 0.0
    %1656 = vmatprep.subr.mxu0 0.0
    %1657 = vmatpush2.xpose.msra.mxu0 0.0
    %1658 = vmatprep.subr.mxu0 0.0
    %1659 = vmatpush2.xpose.msra.mxu0 0.0
    %1660 = vmatprep.subr.mxu0 0.0
    %1661 = vmatpush2.xpose.msra.mxu0 0.0
    %1662 = vmatprep.subr.mxu0 0.0
    %1663 = vmatpush2.xpose.msra.mxu0 0.0
    %1664 = vmatprep.subr.mxu0 0.0
    %1665 = vmatpush2.xpose.msra.mxu0 0.0
    %1666 = vmatprep.subr.mxu0 0.0
    %1667 = vmatpush2.xpose.msra.mxu0 0.0
    %1668 = vmatprep.subr.mxu0 0.0
    %1669 = vmatpush2.xpose.msra.mxu0 0.0
    %1670 = vmatprep.subr.mxu0 0.0
    %1671 = vmatpush2.xpose.msra.mxu0 0.0
    %1672 = vmatprep.mubr.f32.mxu0 0.0
    %1673 = vmatmul.mubr.f32.gmra.mxu0 %v1604
    %v1674 = vpop.f32.mrf.mxu0
    %v1675 = vadd.f32 0.0, %v1674
    %v1676 = vpop.f32.mrf.mxu0
    %1677 = vdwg.mxu0
    %v1678 = vsel %vm155, %v1675, -inf
    %1679 = vmax.xlane.f32.xlu0 %v1678
    %v1680 = vpop.xlane.xlu0 %1679
    %v1681 = vsub.f32 %v1675, %v1680
    %v1682 = vmul.f32 %v1681, 1.442695
    %v1683 = vpow.pop %v1682
    %v1684 = vsel %vm155, %v1683, 0.0
    %1685 = vadd.xlane.f32.xlu0 %v1684
    %v1686 = vpop.xlane.xlu0 %1685
    %v1687 = vrcp.pop %v1686
    %v1688 = vmul.f32 %v1683, %v1687
    %1689 = vrot.lane.b32.xlu0 %v149, 48
    %v1690 = vpop.permute.xlu0 %1689
    %v1693 = vsel %vm155, %v1688, 0
    %1695 = vmatprep.subr.mxu0 0.0
    %1696 = vmatpush1.msra.mxu0 0.0
    %1697 = vmatprep.subr.mxu0 0.0
    %1698 = vmatpush1.msra.mxu0 0.0
    %1699 = vmatprep.subr.mxu0 0.0
    %1700 = vmatpush1.msra.mxu0 0.0
    %1701 = vmatprep.subr.mxu0 0.0
    %1702 = vmatpush1.msra.mxu0 0.0
    %1703 = vmatprep.subr.mxu0 0.0
    %1704 = vmatpush1.msra.mxu0 0.0
    %1705 = vmatprep.subr.mxu0 0.0
    %1706 = vmatpush1.msra.mxu0 0.0
    %1707 = vmatprep.subr.mxu0 0.0
    %1708 = vmatpush1.msra.mxu0 0.0
    %1709 = vmatprep.subr.mxu0 0.0
    %1710 = vmatpush1.msra.mxu0 0.0
    %1711 = vmatprep.subr.mxu0 0.0
    %1712 = vmatpush1.msra.mxu0 0.0
    %1713 = vmatprep.subr.mxu0 0.0
    %1714 = vmatpush1.msra.mxu0 0.0
    %1715 = vmatprep.subr.mxu0 0.0
    %1716 = vmatpush1.msra.mxu0 0.0
    %1717 = vmatprep.subr.mxu0 0.0
    %1718 = vmatpush1.msra.mxu0 0.0
    %1719 = vmatprep.subr.mxu0 0.0
    %1720 = vmatpush1.msra.mxu0 0.0
    %1721 = vmatprep.subr.mxu0 0.0
    %1722 = vmatpush1.msra.mxu0 0.0
    %1723 = vmatprep.subr.mxu0 0.0
    %1724 = vmatpush1.msra.mxu0 0.0
    %1725 = vmatprep.subr.mxu0 0.0
    %1726 = vmatpush1.msra.mxu0 %v1690
    %1727 = vmatprep.subr.mxu0 0.0
    %1728 = vmatpush2.msra.mxu0 0.0
    %1729 = vmatprep.subr.mxu0 0.0
    %1730 = vmatpush2.msra.mxu0 0.0
    %1731 = vmatprep.subr.mxu0 0.0
    %1732 = vmatpush2.msra.mxu0 0.0
    %1733 = vmatprep.subr.mxu0 0.0
    %1734 = vmatpush2.msra.mxu0 0.0
    %1735 = vmatprep.subr.mxu0 0.0
    %1736 = vmatpush2.msra.mxu0 0.0
    %1737 = vmatprep.subr.mxu0 0.0
    %1738 = vmatpush2.msra.mxu0 0.0
    %1739 = vmatprep.subr.mxu0 0.0
    %1740 = vmatpush2.msra.mxu0 0.0
    %1741 = vmatprep.subr.mxu0 0.0
    %1742 = vmatpush2.msra.mxu0 0.0
    %1743 = vmatprep.subr.mxu0 0.0
    %1744 = vmatpush2.msra.mxu0 0.0
    %1745 = vmatprep.subr.mxu0 0.0
    %1746 = vmatpush2.msra.mxu0 0.0
    %1747 = vmatprep.subr.mxu0 0.0
    %1748 = vmatpush2.msra.mxu0 0.0
    %1749 = vmatprep.subr.mxu0 0.0
    %1750 = vmatpush2.msra.mxu0 0.0
    %1751 = vmatprep.subr.mxu0 0.0
    %1752 = vmatpush2.msra.mxu0 0.0
    %1753 = vmatprep.subr.mxu0 0.0
    %1754 = vmatpush2.msra.mxu0 0.0
    %1755 = vmatprep.subr.mxu0 0.0
    %1756 = vmatpush2.msra.mxu0 0.0
    %1757 = vmatprep.subr.mxu0 0.0
    %1758 = vmatpush2.msra.mxu0 0.0
    %1759 = vmatprep.mubr.f32.mxu0 0.0
    %1760 = vmatmul.mubr.f32.gmra.mxu0 %v1693
    %v1761 = vpop.f32.mrf.mxu0
    %v1762 = vadd.f32 0.0, %v1761
    %v1763 = vpop.f32.mrf.mxu0
    %1764 = vdwg.mxu0
    %v1765 = vld [vmem:[%s3 + $0x10] sm:$0xff]
    %v1767 = vsel %vm155, %v1762, 0
    %1769 = vmatprep.subr.mxu0 0.0
    %1770 = vmatpush1.msra.mxu0 0.0
    %1771 = vmatprep.subr.mxu0 0.0
    %1772 = vmatpush1.msra.mxu0 0.0
    %1773 = vmatprep.subr.mxu0 0.0
    %1774 = vmatpush1.msra.mxu0 0.0
    %1775 = vmatprep.subr.mxu0 0.0
    %1776 = vmatpush1.msra.mxu0 0.0
    %1777 = vmatprep.subr.mxu0 0.0
    %1778 = vmatpush1.msra.mxu0 0.0
    %1779 = vmatprep.subr.mxu0 0.0
    %1780 = vmatpush1.msra.mxu0 0.0
    %1781 = vmatprep.subr.mxu0 0.0
    %1782 = vmatpush1.msra.mxu0 0.0
    %1783 = vmatprep.subr.mxu0 0.0
    %1784 = vmatpush1.msra.mxu0 0.0
    %1785 = vmatprep.subr.mxu0 0.0
    %1786 = vmatpush1.msra.mxu0 0.0
    %1787 = vmatprep.subr.mxu0 0.0
    %1788 = vmatpush1.msra.mxu0 0.0
    %1789 = vmatprep.subr.mxu0 0.0
    %1790 = vmatpush1.msra.mxu0 0.0
    %1791 = vmatprep.subr.mxu0 0.0
    %1792 = vmatpush1.msra.mxu0 0.0
    %1793 = vmatprep.subr.mxu0 0.0
    %1794 = vmatpush1.msra.mxu0 0.0
    %1795 = vmatprep.subr.mxu0 0.0
    %1796 = vmatpush1.msra.mxu0 0.0
    %1797 = vmatprep.subr.mxu0 0.0
    %1798 = vmatpush1.msra.mxu0 0.0
    %1799 = vmatprep.subr.mxu0 0.0
    %1800 = vmatpush1.msra.mxu0 %v1765
    %1801 = vmatprep.subr.mxu0 0.0
    %1802 = vmatpush2.msra.mxu0 0.0
    %1803 = vmatprep.subr.mxu0 0.0
    %1804 = vmatpush2.msra.mxu0 0.0
    %1805 = vmatprep.subr.mxu0 0.0
    %1806 = vmatpush2.msra.mxu0 0.0
    %1807 = vmatprep.subr.mxu0 0.0
    %1808 = vmatpush2.msra.mxu0 0.0
    %1809 = vmatprep.subr.mxu0 0.0
    %1810 = vmatpush2.msra.mxu0 0.0
    %1811 = vmatprep.subr.mxu0 0.0
    %1812 = vmatpush2.msra.mxu0 0.0
    %1813 = vmatprep.subr.mxu0 0.0
    %1814 = vmatpush2.msra.mxu0 0.0
    %1815 = vmatprep.subr.mxu0 0.0
    %1816 = vmatpush2.msra.mxu0 0.0
    %1817 = vmatprep.subr.mxu0 0.0
    %1818 = vmatpush2.msra.mxu0 0.0
    %1819 = vmatprep.subr.mxu0 0.0
    %1820 = vmatpush2.msra.mxu0 0.0
    %1821 = vmatprep.subr.mxu0 0.0
    %1822 = vmatpush2.msra.mxu0 0.0
    %1823 = vmatprep.subr.mxu0 0.0
    %1824 = vmatpush2.msra.mxu0 0.0
    %1825 = vmatprep.subr.mxu0 0.0
    %1826 = vmatpush2.msra.mxu0 0.0
    %1827 = vmatprep.subr.mxu0 0.0
    %1828 = vmatpush2.msra.mxu0 0.0
    %1829 = vmatprep.subr.mxu0 0.0
    %1830 = vmatpush2.msra.mxu0 0.0
    %1831 = vmatprep.subr.mxu0 0.0
    %1832 = vmatpush2.msra.mxu0 0.0
    %1833 = vmatprep.mubr.f32.mxu0 0.0
    %1834 = vmatmul.mubr.f32.gmra.mxu0 %v1767
    %v1835 = vpop.f32.mrf.mxu0
    %v1836 = vadd.f32 0.0, %v1835
    %v1837 = vpop.f32.mrf.mxu0
    %1838 = vdwg.mxu0
    %v1839 = vadd.f32 %v1597, %v1836
    %1840 = vrot.lane.b32.xlu0 %v129, 104
    %v1841 = vpop.permute.xlu0 %1840
    %1842 = vrot.lane.b32.xlu0 %v139, 72
    %v1843 = vpop.permute.xlu0 %1842
    %v1844 = vsel %vm155, %v1841, 0
    %v1846 = vsel %vm155, %v1843, 0
    %1848 = vmatprep.subr.mxu0 0.0
    %1849 = vmatpush1.xpose.msra.mxu0 0.0
    %1850 = vmatprep.subr.mxu0 0.0
    %1851 = vmatpush1.xpose.msra.mxu0 0.0
    %1852 = vmatprep.subr.mxu0 0.0
    %1853 = vmatpush1.xpose.msra.mxu0 0.0
    %1854 = vmatprep.subr.mxu0 0.0
    %1855 = vmatpush1.xpose.msra.mxu0 0.0
    %1856 = vmatprep.subr.mxu0 0.0
    %1857 = vmatpush1.xpose.msra.mxu0 0.0
    %1858 = vmatprep.subr.mxu0 0.0
    %1859 = vmatpush1.xpose.msra.mxu0 0.0
    %1860 = vmatprep.subr.mxu0 0.0
    %1861 = vmatpush1.xpose.msra.mxu0 0.0
    %1862 = vmatprep.subr.mxu0 0.0
    %1863 = vmatpush1.xpose.msra.mxu0 0.0
    %1864 = vmatprep.subr.mxu0 0.0
    %1865 = vmatpush1.xpose.msra.mxu0 0.0
    %1866 = vmatprep.subr.mxu0 0.0
    %1867 = vmatpush1.xpose.msra.mxu0 0.0
    %1868 = vmatprep.subr.mxu0 0.0
    %1869 = vmatpush1.xpose.msra.mxu0 0.0
    %1870 = vmatprep.subr.mxu0 0.0
    %1871 = vmatpush1.xpose.msra.mxu0 0.0
    %1872 = vmatprep.subr.mxu0 0.0
    %1873 = vmatpush1.xpose.msra.mxu0 0.0
    %1874 = vmatprep.subr.mxu0 0.0
    %1875 = vmatpush1.xpose.msra.mxu0 0.0
    %1876 = vmatprep.subr.mxu0 0.0
    %1877 = vmatpush1.xpose.msra.mxu0 0.0
    %1878 = vmatprep.subr.mxu0 0.0
    %1879 = vmatpush1.xpose.msra.mxu0 %v1846
    %1880 = vmatprep.subr.mxu0 0.0
    %1881 = vmatpush2.xpose.msra.mxu0 0.0
    %1882 = vmatprep.subr.mxu0 0.0
    %1883 = vmatpush2.xpose.msra.mxu0 0.0
    %1884 = vmatprep.subr.mxu0 0.0
    %1885 = vmatpush2.xpose.msra.mxu0 0.0
    %1886 = vmatprep.subr.mxu0 0.0
    %1887 = vmatpush2.xpose.msra.mxu0 0.0
    %1888 = vmatprep.subr.mxu0 0.0
    %1889 = vmatpush2.xpose.msra.mxu0 0.0
    %1890 = vmatprep.subr.mxu0 0.0
    %1891 = vmatpush2.xpose.msra.mxu0 0.0
    %1892 = vmatprep.subr.mxu0 0.0
    %1893 = vmatpush2.xpose.msra.mxu0 0.0
    %1894 = vmatprep.subr.mxu0 0.0
    %1895 = vmatpush2.xpose.msra.mxu0 0.0
    %1896 = vmatprep.subr.mxu0 0.0
    %1897 = vmatpush2.xpose.msra.mxu0 0.0
    %1898 = vmatprep.subr.mxu0 0.0
    %1899 = vmatpush2.xpose.msra.mxu0 0.0
    %1900 = vmatprep.subr.mxu0 0.0
    %1901 = vmatpush2.xpose.msra.mxu0 0.0
    %1902 = vmatprep.subr.mxu0 0.0
    %1903 = vmatpush2.xpose.msra.mxu0 0.0
    %1904 = vmatprep.subr.mxu0 0.0
    %1905 = vmatpush2.xpose.msra.mxu0 0.0
    %1906 = vmatprep.subr.mxu0 0.0
    %1907 = vmatpush2.xpose.msra.mxu0 0.0
    %1908 = vmatprep.subr.mxu0 0.0
    %1909 = vmatpush2.xpose.msra.mxu0 0.0
    %1910 = vmatprep.subr.mxu0 0.0
    %1911 = vmatpush2.xpose.msra.mxu0 0.0
    %1912 = vmatprep.mubr.f32.mxu0 0.0
    %1913 = vmatmul.mubr.f32.gmra.mxu0 %v1844
    %v1914 = vpop.f32.mrf.mxu0
    %v1915 = vadd.f32 0.0, %v1914
    %v1916 = vpop.f32.mrf.mxu0
    %1917 = vdwg.mxu0
    %v1918 = vsel %vm155, %v1915, -inf
    %1919 = vmax.xlane.f32.xlu0 %v1918
    %v1920 = vpop.xlane.xlu0 %1919
    %v1921 = vsub.f32 %v1915, %v1920
    %v1922 = vmul.f32 %v1921, 1.442695
    %v1923 = vpow.pop %v1922
    %v1924 = vsel %vm155, %v1923, 0.0
    %1925 = vadd.xlane.f32.xlu0 %v1924
    %v1926 = vpop.xlane.xlu0 %1925
    %v1927 = vrcp.pop %v1926
    %v1928 = vmul.f32 %v1923, %v1927
    %1929 = vrot.lane.b32.xlu0 %v149, 40
    %v1930 = vpop.permute.xlu0 %1929
    %v1933 = vsel %vm155, %v1928, 0
    %1935 = vmatprep.subr.mxu0 0.0
    %1936 = vmatpush1.msra.mxu0 0.0
    %1937 = vmatprep.subr.mxu0 0.0
    %1938 = vmatpush1.msra.mxu0 0.0
    %1939 = vmatprep.subr.mxu0 0.0
    %1940 = vmatpush1.msra.mxu0 0.0
    %1941 = vmatprep.subr.mxu0 0.0
    %1942 = vmatpush1.msra.mxu0 0.0
    %1943 = vmatprep.subr.mxu0 0.0
    %1944 = vmatpush1.msra.mxu0 0.0
    %1945 = vmatprep.subr.mxu0 0.0
    %1946 = vmatpush1.msra.mxu0 0.0
    %1947 = vmatprep.subr.mxu0 0.0
    %1948 = vmatpush1.msra.mxu0 0.0
    %1949 = vmatprep.subr.mxu0 0.0
    %1950 = vmatpush1.msra.mxu0 0.0
    %1951 = vmatprep.subr.mxu0 0.0
    %1952 = vmatpush1.msra.mxu0 0.0
    %1953 = vmatprep.subr.mxu0 0.0
    %1954 = vmatpush1.msra.mxu0 0.0
    %1955 = vmatprep.subr.mxu0 0.0
    %1956 = vmatpush1.msra.mxu0 0.0
    %1957 = vmatprep.subr.mxu0 0.0
    %1958 = vmatpush1.msra.mxu0 0.0
    %1959 = vmatprep.subr.mxu0 0.0
    %1960 = vmatpush1.msra.mxu0 0.0
    %1961 = vmatprep.subr.mxu0 0.0
    %1962 = vmatpush1.msra.mxu0 0.0
    %1963 = vmatprep.subr.mxu0 0.0
    %1964 = vmatpush1.msra.mxu0 0.0
    %1965 = vmatprep.subr.mxu0 0.0
    %1966 = vmatpush1.msra.mxu0 %v1930
    %1967 = vmatprep.subr.mxu0 0.0
    %1968 = vmatpush2.msra.mxu0 0.0
    %1969 = vmatprep.subr.mxu0 0.0
    %1970 = vmatpush2.msra.mxu0 0.0
    %1971 = vmatprep.subr.mxu0 0.0
    %1972 = vmatpush2.msra.mxu0 0.0
    %1973 = vmatprep.subr.mxu0 0.0
    %1974 = vmatpush2.msra.mxu0 0.0
    %1975 = vmatprep.subr.mxu0 0.0
    %1976 = vmatpush2.msra.mxu0 0.0
    %1977 = vmatprep.subr.mxu0 0.0
    %1978 = vmatpush2.msra.mxu0 0.0
    %1979 = vmatprep.subr.mxu0 0.0
    %1980 = vmatpush2.msra.mxu0 0.0
    %1981 = vmatprep.subr.mxu0 0.0
    %1982 = vmatpush2.msra.mxu0 0.0
    %1983 = vmatprep.subr.mxu0 0.0
    %1984 = vmatpush2.msra.mxu0 0.0
    %1985 = vmatprep.subr.mxu0 0.0
    %1986 = vmatpush2.msra.mxu0 0.0
    %1987 = vmatprep.subr.mxu0 0.0
    %1988 = vmatpush2.msra.mxu0 0.0
    %1989 = vmatprep.subr.mxu0 0.0
    %1990 = vmatpush2.msra.mxu0 0.0
    %1991 = vmatprep.subr.mxu0 0.0
    %1992 = vmatpush2.msra.mxu0 0.0
    %1993 = vmatprep.subr.mxu0 0.0
    %1994 = vmatpush2.msra.mxu0 0.0
    %1995 = vmatprep.subr.mxu0 0.0
    %1996 = vmatpush2.msra.mxu0 0.0
    %1997 = vmatprep.subr.mxu0 0.0
    %1998 = vmatpush2.msra.mxu0 0.0
    %1999 = vmatprep.mubr.f32.mxu0 0.0
    %2000 = vmatmul.mubr.f32.gmra.mxu0 %v1933
    %v2001 = vpop.f32.mrf.mxu0
    %v2002 = vadd.f32 0.0, %v2001
    %v2003 = vpop.f32.mrf.mxu0
    %2004 = vdwg.mxu0
    %v2005 = vld [vmem:[%s3 + $0x18] sm:$0xff]
    %v2007 = vsel %vm155, %v2002, 0
    %2009 = vmatprep.subr.mxu0 0.0
    %2010 = vmatpush1.msra.mxu0 0.0
    %2011 = vmatprep.subr.mxu0 0.0
    %2012 = vmatpush1.msra.mxu0 0.0
    %2013 = vmatprep.subr.mxu0 0.0
    %2014 = vmatpush1.msra.mxu0 0.0
    %2015 = vmatprep.subr.mxu0 0.0
    %2016 = vmatpush1.msra.mxu0 0.0
    %2017 = vmatprep.subr.mxu0 0.0
    %2018 = vmatpush1.msra.mxu0 0.0
    %2019 = vmatprep.subr.mxu0 0.0
    %2020 = vmatpush1.msra.mxu0 0.0
    %2021 = vmatprep.subr.mxu0 0.0
    %2022 = vmatpush1.msra.mxu0 0.0
    %2023 = vmatprep.subr.mxu0 0.0
    %2024 = vmatpush1.msra.mxu0 0.0
    %2025 = vmatprep.subr.mxu0 0.0
    %2026 = vmatpush1.msra.mxu0 0.0
    %2027 = vmatprep.subr.mxu0 0.0
    %2028 = vmatpush1.msra.mxu0 0.0
    %2029 = vmatprep.subr.mxu0 0.0
    %2030 = vmatpush1.msra.mxu0 0.0
    %2031 = vmatprep.subr.mxu0 0.0
    %2032 = vmatpush1.msra.mxu0 0.0
    %2033 = vmatprep.subr.mxu0 0.0
    %2034 = vmatpush1.msra.mxu0 0.0
    %2035 = vmatprep.subr.mxu0 0.0
    %2036 = vmatpush1.msra.mxu0 0.0
    %2037 = vmatprep.subr.mxu0 0.0
    %2038 = vmatpush1.msra.mxu0 0.0
    %2039 = vmatprep.subr.mxu0 0.0
    %2040 = vmatpush1.msra.mxu0 %v2005
    %2041 = vmatprep.subr.mxu0 0.0
    %2042 = vmatpush2.msra.mxu0 0.0
    %2043 = vmatprep.subr.mxu0 0.0
    %2044 = vmatpush2.msra.mxu0 0.0
    %2045 = vmatprep.subr.mxu0 0.0
    %2046 = vmatpush2.msra.mxu0 0.0
    %2047 = vmatprep.subr.mxu0 0.0
    %2048 = vmatpush2.msra.mxu0 0.0
    %2049 = vmatprep.subr.mxu0 0.0
    %2050 = vmatpush2.msra.mxu0 0.0
    %2051 = vmatprep.subr.mxu0 0.0
    %2052 = vmatpush2.msra.mxu0 0.0
    %2053 = vmatprep.subr.mxu0 0.0
    %2054 = vmatpush2.msra.mxu0 0.0
    %2055 = vmatprep.subr.mxu0 0.0
    %2056 = vmatpush2.msra.mxu0 0.0
    %2057 = vmatprep.subr.mxu0 0.0
    %2058 = vmatpush2.msra.mxu0 0.0
    %2059 = vmatprep.subr.mxu0 0.0
    %2060 = vmatpush2.msra.mxu0 0.0
    %2061 = vmatprep.subr.mxu0 0.0
    %2062 = vmatpush2.msra.mxu0 0.0
    %2063 = vmatprep.subr.mxu0 0.0
    %2064 = vmatpush2.msra.mxu0 0.0
    %2065 = vmatprep.subr.mxu0 0.0
    %2066 = vmatpush2.msra.mxu0 0.0
    %2067 = vmatprep.subr.mxu0 0.0
    %2068 = vmatpush2.msra.mxu0 0.0
    %2069 = vmatprep.subr.mxu0 0.0
    %2070 = vmatpush2.msra.mxu0 0.0
    %2071 = vmatprep.subr.mxu0 0.0
    %2072 = vmatpush2.msra.mxu0 0.0
    %2073 = vmatprep.mubr.f32.mxu0 0.0
    %2074 = vmatmul.mubr.f32.gmra.mxu0 %v2007
    %v2075 = vpop.f32.mrf.mxu0
    %v2076 = vadd.f32 0.0, %v2075
    %v2077 = vpop.f32.mrf.mxu0
    %2078 = vdwg.mxu0
    %v2079 = vadd.f32 %v1839, %v2076
    %v2080 = vld [vmem:[%s4] sm:$0x1]
    %v2082 = vlaneseq
    %v2083 = vshrl.u32 %v2082, 7
    %v2084 = vsub.s32 0, %v2083
    %v2085 = vrot.slane %v2080, %v2084
    %v2087 = vadd.f32 %v2079, %v2085
    %2088 = vst.msk [vmem:[#allocation2 + $0x8] sm:$0xff] %vm38, %v2087
    // Predicated region
    $region22: #{tpu_custom_call.1} parent=1 // pred_check
      _
    $region23: #{tpu_custom_call.1} parent=1 // pred_check_branch
      %2090 = sbr.rel (0) target = $region25
    $region24: #{tpu_custom_call.1} parent=1 // pred_region
      %s2092 = ssub.s32 256, 256
      %2093 = vsyncadd [#allocation3], %s2092
      %s2094 = sshll.u32 [#allocation2], 4
      %s2095 = int_to_ptr.vmem [resolvable:$true] %s2094
      %2100 = dma.vmem_to_hbm [thread:$0]  %s2095, 256, %s5, [#allocation3], 128, 128, 8
    $region25: #{tpu_custom_call.1} parent=1 // pred_fallthru
      _
    // Predicated region
    $region26: #{tpu_custom_call.1} parent=1 // pred_check
      _
    $region27: #{tpu_custom_call.1} parent=1 // pred_check_branch
      %2102 = sbr.rel (0) target = $region29
    $region28: #{tpu_custom_call.1} parent=1 // pred_region
      %2103 = dma.done [#allocation3], 256
    $region29: #{tpu_custom_call.1} parent=1 // pred_fallthru
      _
    %2104 = vsyncpa [#allocation3], 1

</llo_original>
